<compile_context>
chip_gen: v6e
topology: v6e:2x2x1
jax: 0.10.0
libtpu: 0.0.40
codegen_flags: <defaults>
</compile_context>

<pallas_src>
import math
import functools
import numpy as np

import jax
import jax.numpy as jnp
from jax.experimental import pallas as pl
from jax.experimental.pallas import tpu as pltpu


# ----------------------------- small math helpers -----------------------------------------

def _layernorm(x, g, b, eps=1e-6):
    mu = jnp.mean(x, axis=-1, keepdims=True)
    var = jnp.mean((x - mu) ** 2, axis=-1, keepdims=True)
    return (x - mu) * jax.lax.rsqrt(var + eps) * g + b


def _gelu_tanh(x):
    # tanh-approximate GELU (EUP-friendly).  Used identically in kernel + reference.
    # TODO(synk): THP uses exact erf GELU; tanh approx differs by <~3e-4 absolute.
    c = math.sqrt(2.0 / math.pi)
    return 0.5 * x * (1.0 + jnp.tanh(c * (x + 0.044715 * x * x * x)))


# ----------------------------- parameter repacking (shared by kernel + reference) ---------

def _prepare_params(params, *, d_k, weight_dtype):
    """Transpose torch (out,in) weights to (in,out); fold 1/sqrt(d_k) into Wq;
    store the big matrices in `weight_dtype` (bf16 by default -> halved weight DMA),
    biases / LN params in f32."""
    f32 = jnp.float32
    temperature = d_k ** 0.5
    D = params["w_qs"].shape[1]
    d_inner = params["w1"].shape[0]
    return {
        "wq": (params["w_qs"].T / temperature).astype(weight_dtype),   # (D, H*dk)
        "wk": params["w_ks"].T.astype(weight_dtype),                   # (D, H*dk)
        "wv": params["w_vs"].T.astype(weight_dtype),                   # (D, H*dv)
        "fcw": params["fc_w"].T.astype(weight_dtype),                  # (H*dv, D)
        "fcb": params["fc_b"].reshape(1, D).astype(f32),
        "ln1_g": params["ln1_g"].reshape(1, D).astype(f32),
        "ln1_b": params["ln1_b"].reshape(1, D).astype(f32),
        "ln2_g": params["ln2_g"].reshape(1, D).astype(f32),
        "ln2_b": params["ln2_b"].reshape(1, D).astype(f32),
        "w1": params["w1"].T.astype(weight_dtype),                     # (D, d_inner)
        "b1": params["b1"].reshape(1, d_inner).astype(f32),
        "w2": params["w2"].T.astype(weight_dtype),                     # (d_inner, D)
        "b2": params["b2"].reshape(1, D).astype(f32),
    }


# ----------------------------- Pallas kernel ----------------------------------------------

def decoder_layer_kernel(lens_ref,                              # scalar prefetch (SMEM)
                         q_ref, k_ref, v_ref,
                         ln1g_ref, ln1b_ref,
                         wq_ref, wk_ref, wv_ref, fcw_ref, fcb_ref,
                         ln2g_ref, ln2b_ref,
                         w1_ref, b1_ref, w2_ref, b2_ref,
                         *rest,
                         n_head, d_k, d_v, return_attn):
    if return_attn:
        out_ref, attn_ref, kproj_scr, vproj_scr = rest
    else:
        out_ref, kproj_scr, vproj_scr = rest
        attn_ref = None

    f32 = jnp.float32
    b = pl.program_id(0)
    qi = pl.program_id(1)
    seq_len = lens_ref[b]                       # scalar int32 from SMEM

    # ---- Project K and V once per batch element; scratch persists across q tiles ----
    @pl.when(qi == 0)
    def _():
        kx = k_ref[0].astype(f32)               # (Lk, D)
        vx = v_ref[0].astype(f32)
        kproj_scr[...] = jnp.dot(kx, wk_ref[...].astype(f32),
                                 preferred_element_type=f32)     # (Lk, H*dk)
        vproj_scr[...] = jnp.dot(vx, wv_ref[...].astype(f32),
                                 preferred_element_type=f32)     # (Lk, H*dv)

    x = q_ref[0].astype(f32)                    # (TQ, D)
    tq = x.shape[0]
    lk = kproj_scr.shape[0]
    residual = x

    # ---- MultiHeadAttention: pre-LN on q only (THP); 1/sqrt(d_k) folded into Wq ----
    qn = _layernorm(x, ln1g_ref[0], ln1b_ref[0])
    q_all = jnp.dot(qn, wq_ref[...].astype(f32), preferred_element_type=f32)  # (TQ, H*dk)

    # ---- In-kernel masks from the scalar sequence length (no O(L^2) mask DMA) ----
    row = qi * tq + jax.lax.broadcasted_iota(jnp.int32, (tq, lk), 0)
    col = jax.lax.broadcasted_iota(jnp.int32, (tq, lk), 1)
    amask = jnp.where(jnp.logical_or(col > row, col >= seq_len), -1e9, 0.0)   # (TQ, Lk)
    nonpad = (qi * tq + jax.lax.broadcasted_iota(jnp.int32, (tq, 1), 0)
              < seq_len).astype(f32)                                          # (TQ, 1)

    k_all = kproj_scr[...]                      # (Lk, H*dk) f32
    v_all = vproj_scr[...]                      # (Lk, H*dv) f32

    # ---- Per-head attention; head outputs kept in registers ----
    # Note: fully-masked (padded) query rows get a uniform softmax over the valid
    # keys, matching the reference; they are zeroed by non_pad_mask afterwards.
    head_outs = []
    for h in range(n_head):
        qh = q_all[:, h * d_k:(h + 1) * d_k]                    # (TQ, dk)
        kh = k_all[:, h * d_k:(h + 1) * d_k]                    # (Lk, dk)
        vh = v_all[:, h * d_v:(h + 1) * d_v]                    # (Lk, dv)
        # q @ k^T without an explicit transpose: contract d_k against d_k.
        s = jax.lax.dot_general(qh, kh, (((1,), (1,)), ((), ())),
                                preferred_element_type=f32) + amask
        s = s - jnp.max(s, axis=-1, keepdims=True)
        p = jnp.exp(s)
        attn = p / jnp.sum(p, axis=-1, keepdims=True)
        if attn_ref is not None:
            attn_ref[0, h] = attn.astype(attn_ref.dtype)
        head_outs.append(jnp.dot(attn, vh, preferred_element_type=f32))   # (TQ, dv)

    # ---- Single wide output projection over concatenated heads ----
    o = jnp.concatenate(head_outs, axis=-1)                     # (TQ, H*dv)
    dec = jnp.dot(o, fcw_ref[...].astype(f32), preferred_element_type=f32)
    dec = dec + fcb_ref[0] + residual           # dropout = identity at inference
    dec = dec * nonpad                          # non_pad_mask before the FFN

    # ---- PositionwiseFeedForward (pre-LN) ----
    ffn_res = dec
    hdn = _layernorm(dec, ln2g_ref[0], ln2b_ref[0])
    hdn = jnp.dot(hdn, w1_ref[...].astype(f32), preferred_element_type=f32) + b1_ref[0]
    hdn = _gelu_tanh(hdn)
    hdn = jnp.dot(hdn, w2_ref[...].astype(f32), preferred_element_type=f32) + b2_ref[0]
    dec = hdn + ffn_res
    dec = dec * nonpad                          # non_pad_mask after the FFN

    out_ref[0] = dec.astype(out_ref.dtype)


# ----------------------------- wrapper -----------------------------------------------------

def decoder_layer_pallas(dec_input, k, v, seq_lens, params, *, n_head, d_k, d_v,
                         block_q=128, return_attn=True,
                         weight_dtype=jnp.bfloat16, act_dtype=jnp.bfloat16,
                         attn_dtype=jnp.bfloat16, vmem_limit_bytes=None):
    """THP DecoderLayer forward.  Masks (causal + key-padding) and the non-pad mask
    are derived in-kernel from `seq_lens` (int32, shape (B,)), matching THP's usage.
    # TODO(synk): arbitrary user-supplied masks would need to be DMA'd as tensors."""
    B, Lq, D = dec_input.shape
    Lk = k.shape[1]
    tq = min(block_q, Lq)
    assert Lq % tq == 0, "Lq must be divisible by the q tile"   # TODO(synk): ragged Lq
    nq = Lq // tq

    prep = _prepare_params(params, d_k=d_k, weight_dtype=weight_dtype)
    weight_args = (prep["ln1_g"], prep["ln1_b"],
                   prep["wq"], prep["wk"], prep["wv"], prep["fcw"], prep["fcb"],
                   prep["ln2_g"], prep["ln2_b"],
                   prep["w1"], prep["b1"], prep["w2"], prep["b2"])

    def full_spec(arr):
        nd = arr.ndim
        return pl.BlockSpec(arr.shape, lambda bb, qq, lens, _n=nd: (0,) * _n)

    in_specs = ([pl.BlockSpec((1, tq, D), lambda bb, qq, lens: (bb, qq, 0)),
                 pl.BlockSpec((1, Lk, D), lambda bb, qq, lens: (bb, 0, 0)),
                 pl.BlockSpec((1, Lk, D), lambda bb, qq, lens: (bb, 0, 0))]
                + [full_spec(w) for w in weight_args])

    if return_attn:
        out_shape = (jax.ShapeDtypeStruct((B, Lq, D), jnp.float32),
                     jax.ShapeDtypeStruct((B, n_head, Lq, Lk), attn_dtype))
        out_specs = (pl.BlockSpec((1, tq, D), lambda bb, qq, lens: (bb, qq, 0)),
                     pl.BlockSpec((1, n_head, tq, Lk),
                                  lambda bb, qq, lens: (bb, 0, qq, 0)))
    else:
        out_shape = jax.ShapeDtypeStruct((B, Lq, D), jnp.float32)
        out_specs = pl.BlockSpec((1, tq, D), lambda bb, qq, lens: (bb, qq, 0))

    scratch_shapes = [pltpu.VMEM((Lk, n_head * d_k), jnp.float32),   # K projection
                      pltpu.VMEM((Lk, n_head * d_v), jnp.float32)]   # V projection

    cp_kwargs = dict(dimension_semantics=("parallel", "arbitrary"))
    if vmem_limit_bytes is not None:   # e.g. pass a smaller limit on v7x (64 MiB VMEM)
        cp_kwargs["vmem_limit_bytes"] = int(vmem_limit_bytes)

    kern = functools.partial(decoder_layer_kernel, n_head=n_head, d_k=d_k, d_v=d_v,
                             return_attn=return_attn)

    call = pl.pallas_call(
        kern,
        out_shape=out_shape,
        grid_spec=pltpu.PrefetchScalarGridSpec(
            num_scalar_prefetch=1,
            grid=(B, nq),
            in_specs=in_specs,
            out_specs=out_specs,
            scratch_shapes=scratch_shapes),
        compiler_params=pltpu.CompilerParams(**cp_kwargs),
    )
    outs = call(jnp.asarray(seq_lens, dtype=jnp.int32),
                dec_input.astype(jnp.float32),
                k.astype(act_dtype), v.astype(act_dtype),
                *weight_args)
    return outs


# ----------------------------- pure-JAX reference (same numerics recipe) -------------------

def decoder_layer_reference(dec_input, k, v, seq_lens, params, *, n_head, d_k, d_v,
                            weight_dtype=jnp.bfloat16, act_dtype=jnp.bfloat16):
    f32 = jnp.float32
    B, Lq, D = dec_input.shape
    Lk = k.shape[1]
    prep = _prepare_params(params, d_k=d_k, weight_dtype=weight_dtype)
    hi = jax.lax.Precision.HIGHEST

    pos_q = jnp.arange(Lq)
    pos_k = jnp.arange(Lk)
    causal = pos_k[None, None, :] > pos_q[None, :, None]                  # (1, Lq, Lk)
    keypad = pos_k[None, None, :] >= seq_lens[:, None, None]              # (B, 1, Lk)
    amask = jnp.where(jnp.logical_or(causal, keypad), -1e9, 0.0)          # (B, Lq, Lk)
    nonpad = (pos_q[None, :] < seq_lens[:, None]).astype(f32)[..., None]  # (B, Lq, 1)

    residual = dec_input.astype(f32)
    qn = _layernorm(residual, prep["ln1_g"], prep["ln1_b"])
    Q = jnp.einsum("bld,dk->blk", qn, prep["wq"].astype(f32), precision=hi)
    K = jnp.einsum("bld,dk->blk", k.astype(act_dtype).astype(f32),
                   prep["wk"].astype(f32), precision=hi)
    V = jnp.einsum("bld,dk->blk", v.astype(act_dtype).astype(f32),
                   prep["wv"].astype(f32), precision=hi)

    Qh = Q.reshape(B, Lq, n_head, d_k).transpose(0, 2, 1, 3)
    Kh = K.reshape(B, Lk, n_head, d_k).transpose(0, 2, 1, 3)
    Vh = V.reshape(B, Lk, n_head, d_v).transpose(0, 2, 1, 3)

    s = jnp.einsum("bhqd,bhkd->bhqk", Qh, Kh, precision=hi) + amask[:, None]
    s = s - s.max(-1, keepdims=True)
    p = jnp.exp(s)
    attn = p / p.sum(-1, keepdims=True)

    o = jnp.einsum("bhqk,bhkd->bhqd", attn, Vh, precision=hi)
    o = o.transpose(0, 2, 1, 3).reshape(B, Lq, n_head * d_v)
    dec = jnp.einsum("blk,kd->bld", o, prep["fcw"].astype(f32), precision=hi)
    dec = dec + prep["fcb"] + residual
    dec = dec * nonpad

    res2 = dec
    x = _layernorm(dec, prep["ln2_g"], prep["ln2_b"])
    x = jnp.einsum("bld,di->bli", x, prep["w1"].astype(f32), precision=hi) + prep["b1"]
    x = _gelu_tanh(x)
    x = jnp.einsum("bli,id->bld", x, prep["w2"].astype(f32), precision=hi) + prep["b2"]
    x = x + res2
    x = x * nonpad
    return x, attn


# ----------------------------- main ---------------------------------------------------------

if __name__ == "__main__":
    B, L = 2, 8
    d_model, d_inner = 32, 64
    n_head, d_k, d_v = 4, 8, 8

    key = jax.random.PRNGKey(0)
    keys = jax.random.split(key, 12)

    def xavier(kk, shape):  # torch nn.Linear weight layout: (out_features, in_features)
        fan_out, fan_in = shape
        limit = math.sqrt(6.0 / (fan_in + fan_out))
        return jax.random.uniform(kk, shape, jnp.float32, -limit, limit)

    params = {
        "w_qs": xavier(keys[0], (n_head * d_k, d_model)),
        "w_ks": xavier(keys[1], (n_head * d_k, d_model)),
        "w_vs": xavier(keys[2], (n_head * d_v, d_model)),
        "fc_w": xavier(keys[3], (d_model, n_head * d_v)),
        "fc_b": 0.02 * jax.random.normal(keys[4], (d_model,), jnp.float32),
        "ln1_g": jnp.ones((d_model,), jnp.float32),
        "ln1_b": jnp.zeros((d_model,), jnp.float32),
        "w1": xavier(keys[5], (d_inner, d_model)),
        "b1": 0.02 * jax.random.normal(keys[6], (d_inner,), jnp.float32),
        "w2": xavier(keys[7], (d_model, d_inner)),
        "b2": 0.02 * jax.random.normal(keys[8], (d_model,), jnp.float32),
        "ln2_g": jnp.ones((d_model,), jnp.float32),
        "ln2_b": jnp.zeros((d_model,), jnp.float32),
    }

    dec_input = jax.random.normal(keys[9], (B, L, d_model), jnp.float32)
    k_in = jax.random.normal(keys[10], (B, L, d_model), jnp.float32)
    v_in = jax.random.normal(keys[11], (B, L, d_model), jnp.float32)

    # THP-style causal + key-padding masking derived from per-example lengths.
    seq_lens = jnp.array([L, L - 2], dtype=jnp.int32)

    dec_out, dec_attn = decoder_layer_pallas(
        dec_input, k_in, v_in, seq_lens, params,
        n_head=n_head, d_k=d_k, d_v=d_v, block_q=8, return_attn=True)
    dec_out = jax.block_until_ready(dec_out)
    dec_attn = jax.block_until_ready(dec_attn)

    ref_out, ref_attn = decoder_layer_reference(
        dec_input, k_in, v_in, seq_lens, params, n_head=n_head, d_k=d_k, d_v=d_v)

    np.testing.assert_allclose(np.asarray(dec_out), np.asarray(ref_out),
                               rtol=2e-3, atol=2e-3)
    np.testing.assert_allclose(np.asarray(dec_attn, dtype=np.float32),
                               np.asarray(ref_attn),
                               rtol=2e-2, atol=8e-3)   # attn output is bf16 by default
    print("KERNEL_OK")
</pallas_src>

<mosaic_0001>
module attributes {stable_mosaic.version = 11 : i64} {
  func.func @decoder_layer_kernel(%arg0: i32, %arg1: i32, %arg2: memref<2xi32, #tpu.memory_space<smem>>, %arg3: memref<1x8x32xf32, #tpu.memory_space<vmem>>, %arg4: memref<1x8x32xbf16, #tpu.memory_space<vmem>>, %arg5: memref<1x8x32xbf16, #tpu.memory_space<vmem>>, %arg6: memref<1x32xf32, #tpu.memory_space<vmem>>, %arg7: memref<1x32xf32, #tpu.memory_space<vmem>>, %arg8: memref<32x32xbf16, #tpu.memory_space<vmem>>, %arg9: memref<32x32xbf16, #tpu.memory_space<vmem>>, %arg10: memref<32x32xbf16, #tpu.memory_space<vmem>>, %arg11: memref<32x32xbf16, #tpu.memory_space<vmem>>, %arg12: memref<1x32xf32, #tpu.memory_space<vmem>>, %arg13: memref<1x32xf32, #tpu.memory_space<vmem>>, %arg14: memref<1x32xf32, #tpu.memory_space<vmem>>, %arg15: memref<32x64xbf16, #tpu.memory_space<vmem>>, %arg16: memref<1x64xf32, #tpu.memory_space<vmem>>, %arg17: memref<64x32xbf16, #tpu.memory_space<vmem>>, %arg18: memref<1x32xf32, #tpu.memory_space<vmem>>, %arg19: memref<1x8x32xf32, #tpu.memory_space<vmem>>, %arg20: memref<1x4x8x8xbf16, #tpu.memory_space<vmem>>, %arg21: memref<8x32xf32, #tpu.memory_space<vmem>>, %arg22: memref<8x32xf32, #tpu.memory_space<vmem>>) attributes {dimension_semantics = [#tpu.dimension_semantics<parallel>, #tpu.dimension_semantics<arbitrary>], iteration_bounds = array<i64: 2, 1>, scalar_prefetch = 1 : i64, scratch_operands = 2 : i64, tpu.core_type = #tpu.core_type<tc>, window_params = [{transform_indices = @transform_0, window_bounds = array<i64: 1, 8, 32>}, {transform_indices = @transform_1, window_bounds = array<i64: 1, 8, 32>}, {transform_indices = @transform_2, window_bounds = array<i64: 1, 8, 32>}, {pipeline_mode = #tpu.pipeline_mode<synchronous>, transform_indices = @transform_3, window_bounds = array<i64: 1, 32>}, {pipeline_mode = #tpu.pipeline_mode<synchronous>, transform_indices = @transform_4, window_bounds = array<i64: 1, 32>}, {pipeline_mode = #tpu.pipeline_mode<synchronous>, transform_indices = @transform_5, window_bounds = array<i64: 32, 32>}, {pipeline_mode = #tpu.pipeline_mode<synchronous>, transform_indices = @transform_6, window_bounds = array<i64: 32, 32>}, {pipeline_mode = #tpu.pipeline_mode<synchronous>, transform_indices = @transform_7, window_bounds = array<i64: 32, 32>}, {pipeline_mode = #tpu.pipeline_mode<synchronous>, transform_indices = @transform_8, window_bounds = array<i64: 32, 32>}, {pipeline_mode = #tpu.pipeline_mode<synchronous>, transform_indices = @transform_9, window_bounds = array<i64: 1, 32>}, {pipeline_mode = #tpu.pipeline_mode<synchronous>, transform_indices = @transform_10, window_bounds = array<i64: 1, 32>}, {pipeline_mode = #tpu.pipeline_mode<synchronous>, transform_indices = @transform_11, window_bounds = array<i64: 1, 32>}, {pipeline_mode = #tpu.pipeline_mode<synchronous>, transform_indices = @transform_12, window_bounds = array<i64: 32, 64>}, {pipeline_mode = #tpu.pipeline_mode<synchronous>, transform_indices = @transform_13, window_bounds = array<i64: 1, 64>}, {pipeline_mode = #tpu.pipeline_mode<synchronous>, transform_indices = @transform_14, window_bounds = array<i64: 64, 32>}, {pipeline_mode = #tpu.pipeline_mode<synchronous>, transform_indices = @transform_15, window_bounds = array<i64: 1, 32>}, {transform_indices = @transform_16, window_bounds = array<i64: 1, 8, 32>}, {transform_indices = @transform_17, window_bounds = array<i64: 1, 4, 8, 8>}]} {
    %0 = arith.index_cast %arg0 : i32 to index
    %1 = memref.load %arg2[%0] : memref<2xi32, #tpu.memory_space<smem>>
    %c0_i32 = arith.constant 0 : i32
    %2 = arith.cmpi eq, %arg1, %c0_i32 : i32
    %3 = arith.extui %2 : i1 to i32
    %c0_i32_0 = arith.constant 0 : i32
    %4 = arith.cmpi ne, %3, %c0_i32_0 : i32
    scf.if %4 {
      %c0_81 = arith.constant 0 : index
      %c0_82 = arith.constant 0 : index
      %c0_83 = arith.constant 0 : index
      %211 = vector.load %arg4[%c0_81, %c0_82, %c0_83] : memref<1x8x32xbf16, #tpu.memory_space<vmem>>, vector<1x8x32xbf16>
      %212 = vector.shape_cast %211 : vector<1x8x32xbf16> to vector<8x32xbf16>
      %213 = arith.extf %212 : vector<8x32xbf16> to vector<8x32xf32>
      %c0_84 = arith.constant 0 : index
      %c0_85 = arith.constant 0 : index
      %c0_86 = arith.constant 0 : index
      %214 = vector.load %arg5[%c0_84, %c0_85, %c0_86] : memref<1x8x32xbf16, #tpu.memory_space<vmem>>, vector<1x8x32xbf16>
      %215 = vector.shape_cast %214 : vector<1x8x32xbf16> to vector<8x32xbf16>
      %216 = arith.extf %215 : vector<8x32xbf16> to vector<8x32xf32>
      %c0_87 = arith.constant 0 : index
      %c0_88 = arith.constant 0 : index
      %217 = vector.load %arg9[%c0_87, %c0_88] : memref<32x32xbf16, #tpu.memory_space<vmem>>, vector<32x32xbf16>
      %218 = arith.extf %217 : vector<32x32xbf16> to vector<32x32xf32>
      %cst_89 = arith.constant dense<0.000000e+00> : vector<8x32xf32>
      %219 = tpu.matmul %213, %218, %cst_89 {dimension_numbers = #tpu.dot_dimension_numbers<[1], [0], [0], [1], [0, 0, 1, 1], [], []>} : vector<8x32xf32>, vector<32x32xf32>, vector<8x32xf32> -> vector<8x32xf32>
      %c0_90 = arith.constant 0 : index
      %c0_91 = arith.constant 0 : index
      %220 = vector.load %arg21[%c0_90, %c0_91] : memref<8x32xf32, #tpu.memory_space<vmem>>, vector<8x32xf32>
      tpu.vector_store %arg21[%c0_90, %c0_91], %219 {strides = array<i32>} : memref<8x32xf32, #tpu.memory_space<vmem>>, vector<8x32xf32>,
      %c0_92 = arith.constant 0 : index
      %c0_93 = arith.constant 0 : index
      %221 = vector.load %arg10[%c0_92, %c0_93] : memref<32x32xbf16, #tpu.memory_space<vmem>>, vector<32x32xbf16>
      %222 = arith.extf %221 : vector<32x32xbf16> to vector<32x32xf32>
      %cst_94 = arith.constant dense<0.000000e+00> : vector<8x32xf32>
      %223 = tpu.matmul %216, %222, %cst_94 {dimension_numbers = #tpu.dot_dimension_numbers<[1], [0], [0], [1], [0, 0, 1, 1], [], []>} : vector<8x32xf32>, vector<32x32xf32>, vector<8x32xf32> -> vector<8x32xf32>
      %c0_95 = arith.constant 0 : index
      %c0_96 = arith.constant 0 : index
      %224 = vector.load %arg22[%c0_95, %c0_96] : memref<8x32xf32, #tpu.memory_space<vmem>>, vector<8x32xf32>
      tpu.vector_store %arg22[%c0_95, %c0_96], %223 {strides = array<i32>} : memref<8x32xf32, #tpu.memory_space<vmem>>, vector<8x32xf32>,
    } else {
    }
    %c0 = arith.constant 0 : index
    %c0_1 = arith.constant 0 : index
    %c0_2 = arith.constant 0 : index
    %5 = vector.load %arg3[%c0, %c0_1, %c0_2] : memref<1x8x32xf32, #tpu.memory_space<vmem>>, vector<1x8x32xf32>
    %6 = vector.shape_cast %5 : vector<1x8x32xf32> to vector<8x32xf32>
    %c0_3 = arith.constant 0 : index
    %c0_4 = arith.constant 0 : index
    %7 = vector.load %arg6[%c0_3, %c0_4] : memref<1x32xf32, #tpu.memory_space<vmem>>, vector<1x32xf32>
    %8 = vector.shape_cast %7 : vector<1x32xf32> to vector<32xf32>
    %c0_5 = arith.constant 0 : index
    %c0_6 = arith.constant 0 : index
    %9 = vector.load %arg7[%c0_5, %c0_6] : memref<1x32xf32, #tpu.memory_space<vmem>>, vector<1x32xf32>
    %10 = vector.shape_cast %9 : vector<1x32xf32> to vector<32xf32>
    %cst = arith.constant dense<0.000000e+00> : vector<8xf32>
    %11 = vector.multi_reduction <add>, %6, %cst [1] : vector<8x32xf32> to vector<8xf32>
    %12 = vector.shape_cast %11 : vector<8xf32> to vector<8x1xf32>
    %cst_7 = arith.constant 3.200000e+01 : f32
    %13 = vector.broadcast %cst_7 : f32 to vector<8x1xf32>
    %14 = arith.divf %12, %13 : vector<8x1xf32>
    %15 = vector.broadcast %14 : vector<8x1xf32> to vector<8x32xf32>
    %16 = arith.subf %6, %15 : vector<8x32xf32>
    %17 = arith.mulf %16, %16 : vector<8x32xf32>
    %cst_8 = arith.constant dense<0.000000e+00> : vector<8xf32>
    %18 = vector.multi_reduction <add>, %17, %cst_8 [1] : vector<8x32xf32> to vector<8xf32>
    %19 = vector.shape_cast %18 : vector<8xf32> to vector<8x1xf32>
    %cst_9 = arith.constant 3.200000e+01 : f32
    %20 = vector.broadcast %cst_9 : f32 to vector<8x1xf32>
    %21 = arith.divf %19, %20 : vector<8x1xf32>
    %22 = vector.broadcast %14 : vector<8x1xf32> to vector<8x32xf32>
    %23 = arith.subf %6, %22 : vector<8x32xf32>
    %cst_10 = arith.constant 9.99999997E-7 : f32
    %24 = vector.broadcast %cst_10 : f32 to vector<8x1xf32>
    %25 = arith.addf %21, %24 : vector<8x1xf32>
    %26 = math.rsqrt %25 : vector<8x1xf32>
    %27 = vector.broadcast %26 : vector<8x1xf32> to vector<8x32xf32>
    %28 = arith.mulf %23, %27 : vector<8x32xf32>
    %29 = vector.shape_cast %8 : vector<32xf32> to vector<1x32xf32>
    %30 = vector.broadcast %29 : vector<1x32xf32> to vector<8x32xf32>
    %31 = arith.mulf %28, %30 : vector<8x32xf32>
    %32 = vector.shape_cast %10 : vector<32xf32> to vector<1x32xf32>
    %33 = vector.broadcast %32 : vector<1x32xf32> to vector<8x32xf32>
    %34 = arith.addf %31, %33 : vector<8x32xf32>
    %c0_11 = arith.constant 0 : index
    %c0_12 = arith.constant 0 : index
    %35 = vector.load %arg8[%c0_11, %c0_12] : memref<32x32xbf16, #tpu.memory_space<vmem>>, vector<32x32xbf16>
    %36 = arith.extf %35 : vector<32x32xbf16> to vector<32x32xf32>
    %cst_13 = arith.constant dense<0.000000e+00> : vector<8x32xf32>
    %37 = tpu.matmul %34, %36, %cst_13 {dimension_numbers = #tpu.dot_dimension_numbers<[1], [0], [0], [1], [0, 0, 1, 1], [], []>} : vector<8x32xf32>, vector<32x32xf32>, vector<8x32xf32> -> vector<8x32xf32>
    %c8_i32 = arith.constant 8 : i32
    %38 = arith.muli %arg1, %c8_i32 : i32
    %39 = tpu.iota {dimensions = array<i32: 0>} : vector<8x8xi32>
    %40 = vector.broadcast %38 : i32 to vector<8x8xi32>
    %41 = arith.addi %40, %39 : vector<8x8xi32>
    %42 = tpu.iota {dimensions = array<i32: 1>} : vector<8x8xi32>
    %43 = arith.cmpi sgt, %42, %41 : vector<8x8xi32>
    %44 = vector.broadcast %1 : i32 to vector<8x8xi32>
    %45 = arith.cmpi sge, %42, %44 : vector<8x8xi32>
    %46 = arith.ori %43, %45 : vector<8x8xi1>
    %cst_14 = arith.constant -1.000000e+09 : f32
    %cst_15 = arith.constant 0.000000e+00 : f32
    %47 = vector.broadcast %cst_14 : f32 to vector<8x8xf32>
    %48 = vector.broadcast %cst_15 : f32 to vector<8x8xf32>
    %49 = arith.select %46, %47, %48 : vector<8x8xi1>, vector<8x8xf32>
    %c8_i32_16 = arith.constant 8 : i32
    %50 = arith.muli %arg1, %c8_i32_16 : i32
    %51 = tpu.iota {dimensions = array<i32: 0>} : vector<8x1xi32>
    %52 = vector.broadcast %50 : i32 to vector<8x1xi32>
    %53 = arith.addi %52, %51 : vector<8x1xi32>
    %54 = vector.broadcast %1 : i32 to vector<8x1xi32>
    %55 = arith.cmpi slt, %53, %54 : vector<8x1xi32>
    %56 = arith.extui %55 : vector<8x1xi1> to vector<8x1xi32>
    %57 = arith.sitofp %56 : vector<8x1xi32> to vector<8x1xf32>
    %c0_17 = arith.constant 0 : index
    %c0_18 = arith.constant 0 : index
    %58 = vector.load %arg21[%c0_17, %c0_18] : memref<8x32xf32, #tpu.memory_space<vmem>>, vector<8x32xf32>
    %c0_19 = arith.constant 0 : index
    %c0_20 = arith.constant 0 : index
    %59 = vector.load %arg22[%c0_19, %c0_20] : memref<8x32xf32, #tpu.memory_space<vmem>>, vector<8x32xf32>
    %60 = vector.extract_strided_slice %37 {offsets = [0, 0], sizes = [8, 8], strides = [1, 1]} : vector<8x32xf32> to vector<8x8xf32>
    %61 = vector.extract_strided_slice %58 {offsets = [0, 0], sizes = [8, 8], strides = [1, 1]} : vector<8x32xf32> to vector<8x8xf32>
    %62 = vector.extract_strided_slice %59 {offsets = [0, 0], sizes = [8, 8], strides = [1, 1]} : vector<8x32xf32> to vector<8x8xf32>
    %cst_21 = arith.constant dense<0.000000e+00> : vector<8x8xf32>
    %63 = tpu.matmul %60, %61, %cst_21 {dimension_numbers = #tpu.dot_dimension_numbers<[1], [1], [0], [0], [0, 0, 1, 0], [], []>} : vector<8x8xf32>, vector<8x8xf32>, vector<8x8xf32> -> vector<8x8xf32>
    %64 = arith.addf %63, %49 : vector<8x8xf32>
    %cst_22 = arith.constant dense<0xFF800000> : vector<8xf32>
    %65 = vector.multi_reduction <maximumf>, %64, %cst_22 [1] : vector<8x8xf32> to vector<8xf32>
    %66 = vector.shape_cast %65 : vector<8xf32> to vector<8x1xf32>
    %67 = vector.broadcast %66 : vector<8x1xf32> to vector<8x8xf32>
    %68 = arith.subf %64, %67 : vector<8x8xf32>
    %69 = math.exp %68 : vector<8x8xf32>
    %cst_23 = arith.constant dense<0.000000e+00> : vector<8xf32>
    %70 = vector.multi_reduction <add>, %69, %cst_23 [1] : vector<8x8xf32> to vector<8xf32>
    %71 = vector.shape_cast %70 : vector<8xf32> to vector<8x1xf32>
    %72 = vector.broadcast %71 : vector<8x1xf32> to vector<8x8xf32>
    %73 = arith.divf %69, %72 : vector<8x8xf32>
    %74 = arith.truncf %73 : vector<8x8xf32> to vector<8x8xbf16>
    %c0_24 = arith.constant 0 : index
    %c0_25 = arith.constant 0 : index
    %c0_26 = arith.constant 0 : index
    %c0_27 = arith.constant 0 : index
    %75 = vector.load %arg20[%c0_24, %c0_25, %c0_26, %c0_27] : memref<1x4x8x8xbf16, #tpu.memory_space<vmem>>, vector<1x1x8x8xbf16>
    %76 = vector.shape_cast %75 : vector<1x1x8x8xbf16> to vector<8x8xbf16>
    %77 = vector.shape_cast %74 : vector<8x8xbf16> to vector<1x1x8x8xbf16>
    tpu.vector_store %arg20[%c0_24, %c0_25, %c0_26, %c0_27], %77 {strides = array<i32>} : memref<1x4x8x8xbf16, #tpu.memory_space<vmem>>, vector<1x1x8x8xbf16>,
    %cst_28 = arith.constant dense<0.000000e+00> : vector<8x8xf32>
    %78 = tpu.matmul %73, %62, %cst_28 {dimension_numbers = #tpu.dot_dimension_numbers<[1], [0], [0], [1], [0, 0, 1, 1], [], []>} : vector<8x8xf32>, vector<8x8xf32>, vector<8x8xf32> -> vector<8x8xf32>
    %79 = vector.extract_strided_slice %37 {offsets = [0, 8], sizes = [8, 8], strides = [1, 1]} : vector<8x32xf32> to vector<8x8xf32>
    %80 = vector.extract_strided_slice %58 {offsets = [0, 8], sizes = [8, 8], strides = [1, 1]} : vector<8x32xf32> to vector<8x8xf32>
    %81 = vector.extract_strided_slice %59 {offsets = [0, 8], sizes = [8, 8], strides = [1, 1]} : vector<8x32xf32> to vector<8x8xf32>
    %cst_29 = arith.constant dense<0.000000e+00> : vector<8x8xf32>
    %82 = tpu.matmul %79, %80, %cst_29 {dimension_numbers = #tpu.dot_dimension_numbers<[1], [1], [0], [0], [0, 0, 1, 0], [], []>} : vector<8x8xf32>, vector<8x8xf32>, vector<8x8xf32> -> vector<8x8xf32>
    %83 = arith.addf %82, %49 : vector<8x8xf32>
    %cst_30 = arith.constant dense<0xFF800000> : vector<8xf32>
    %84 = vector.multi_reduction <maximumf>, %83, %cst_30 [1] : vector<8x8xf32> to vector<8xf32>
    %85 = vector.shape_cast %84 : vector<8xf32> to vector<8x1xf32>
    %86 = vector.broadcast %85 : vector<8x1xf32> to vector<8x8xf32>
    %87 = arith.subf %83, %86 : vector<8x8xf32>
    %88 = math.exp %87 : vector<8x8xf32>
    %cst_31 = arith.constant dense<0.000000e+00> : vector<8xf32>
    %89 = vector.multi_reduction <add>, %88, %cst_31 [1] : vector<8x8xf32> to vector<8xf32>
    %90 = vector.shape_cast %89 : vector<8xf32> to vector<8x1xf32>
    %91 = vector.broadcast %90 : vector<8x1xf32> to vector<8x8xf32>
    %92 = arith.divf %88, %91 : vector<8x8xf32>
    %93 = arith.truncf %92 : vector<8x8xf32> to vector<8x8xbf16>
    %c0_32 = arith.constant 0 : index
    %c1 = arith.constant 1 : index
    %c0_33 = arith.constant 0 : index
    %c0_34 = arith.constant 0 : index
    %94 = vector.load %arg20[%c0_32, %c1, %c0_33, %c0_34] : memref<1x4x8x8xbf16, #tpu.memory_space<vmem>>, vector<1x1x8x8xbf16>
    %95 = vector.shape_cast %94 : vector<1x1x8x8xbf16> to vector<8x8xbf16>
    %96 = vector.shape_cast %93 : vector<8x8xbf16> to vector<1x1x8x8xbf16>
    tpu.vector_store %arg20[%c0_32, %c1, %c0_33, %c0_34], %96 {strides = array<i32>} : memref<1x4x8x8xbf16, #tpu.memory_space<vmem>>, vector<1x1x8x8xbf16>,
    %cst_35 = arith.constant dense<0.000000e+00> : vector<8x8xf32>
    %97 = tpu.matmul %92, %81, %cst_35 {dimension_numbers = #tpu.dot_dimension_numbers<[1], [0], [0], [1], [0, 0, 1, 1], [], []>} : vector<8x8xf32>, vector<8x8xf32>, vector<8x8xf32> -> vector<8x8xf32>
    %98 = vector.extract_strided_slice %37 {offsets = [0, 16], sizes = [8, 8], strides = [1, 1]} : vector<8x32xf32> to vector<8x8xf32>
    %99 = vector.extract_strided_slice %58 {offsets = [0, 16], sizes = [8, 8], strides = [1, 1]} : vector<8x32xf32> to vector<8x8xf32>
    %100 = vector.extract_strided_slice %59 {offsets = [0, 16], sizes = [8, 8], strides = [1, 1]} : vector<8x32xf32> to vector<8x8xf32>
    %cst_36 = arith.constant dense<0.000000e+00> : vector<8x8xf32>
    %101 = tpu.matmul %98, %99, %cst_36 {dimension_numbers = #tpu.dot_dimension_numbers<[1], [1], [0], [0], [0, 0, 1, 0], [], []>} : vector<8x8xf32>, vector<8x8xf32>, vector<8x8xf32> -> vector<8x8xf32>
    %102 = arith.addf %101, %49 : vector<8x8xf32>
    %cst_37 = arith.constant dense<0xFF800000> : vector<8xf32>
    %103 = vector.multi_reduction <maximumf>, %102, %cst_37 [1] : vector<8x8xf32> to vector<8xf32>
    %104 = vector.shape_cast %103 : vector<8xf32> to vector<8x1xf32>
    %105 = vector.broadcast %104 : vector<8x1xf32> to vector<8x8xf32>
    %106 = arith.subf %102, %105 : vector<8x8xf32>
    %107 = math.exp %106 : vector<8x8xf32>
    %cst_38 = arith.constant dense<0.000000e+00> : vector<8xf32>
    %108 = vector.multi_reduction <add>, %107, %cst_38 [1] : vector<8x8xf32> to vector<8xf32>
    %109 = vector.shape_cast %108 : vector<8xf32> to vector<8x1xf32>
    %110 = vector.broadcast %109 : vector<8x1xf32> to vector<8x8xf32>
    %111 = arith.divf %107, %110 : vector<8x8xf32>
    %112 = arith.truncf %111 : vector<8x8xf32> to vector<8x8xbf16>
    %c0_39 = arith.constant 0 : index
    %c2 = arith.constant 2 : index
    %c0_40 = arith.constant 0 : index
    %c0_41 = arith.constant 0 : index
    %113 = vector.load %arg20[%c0_39, %c2, %c0_40, %c0_41] : memref<1x4x8x8xbf16, #tpu.memory_space<vmem>>, vector<1x1x8x8xbf16>
    %114 = vector.shape_cast %113 : vector<1x1x8x8xbf16> to vector<8x8xbf16>
    %115 = vector.shape_cast %112 : vector<8x8xbf16> to vector<1x1x8x8xbf16>
    tpu.vector_store %arg20[%c0_39, %c2, %c0_40, %c0_41], %115 {strides = array<i32>} : memref<1x4x8x8xbf16, #tpu.memory_space<vmem>>, vector<1x1x8x8xbf16>,
    %cst_42 = arith.constant dense<0.000000e+00> : vector<8x8xf32>
    %116 = tpu.matmul %111, %100, %cst_42 {dimension_numbers = #tpu.dot_dimension_numbers<[1], [0], [0], [1], [0, 0, 1, 1], [], []>} : vector<8x8xf32>, vector<8x8xf32>, vector<8x8xf32> -> vector<8x8xf32>
    %117 = vector.extract_strided_slice %37 {offsets = [0, 24], sizes = [8, 8], strides = [1, 1]} : vector<8x32xf32> to vector<8x8xf32>
    %118 = vector.extract_strided_slice %58 {offsets = [0, 24], sizes = [8, 8], strides = [1, 1]} : vector<8x32xf32> to vector<8x8xf32>
    %119 = vector.extract_strided_slice %59 {offsets = [0, 24], sizes = [8, 8], strides = [1, 1]} : vector<8x32xf32> to vector<8x8xf32>
    %cst_43 = arith.constant dense<0.000000e+00> : vector<8x8xf32>
    %120 = tpu.matmul %117, %118, %cst_43 {dimension_numbers = #tpu.dot_dimension_numbers<[1], [1], [0], [0], [0, 0, 1, 0], [], []>} : vector<8x8xf32>, vector<8x8xf32>, vector<8x8xf32> -> vector<8x8xf32>
    %121 = arith.addf %120, %49 : vector<8x8xf32>
    %cst_44 = arith.constant dense<0xFF800000> : vector<8xf32>
    %122 = vector.multi_reduction <maximumf>, %121, %cst_44 [1] : vector<8x8xf32> to vector<8xf32>
    %123 = vector.shape_cast %122 : vector<8xf32> to vector<8x1xf32>
    %124 = vector.broadcast %123 : vector<8x1xf32> to vector<8x8xf32>
    %125 = arith.subf %121, %124 : vector<8x8xf32>
    %126 = math.exp %125 : vector<8x8xf32>
    %cst_45 = arith.constant dense<0.000000e+00> : vector<8xf32>
    %127 = vector.multi_reduction <add>, %126, %cst_45 [1] : vector<8x8xf32> to vector<8xf32>
    %128 = vector.shape_cast %127 : vector<8xf32> to vector<8x1xf32>
    %129 = vector.broadcast %128 : vector<8x1xf32> to vector<8x8xf32>
    %130 = arith.divf %126, %129 : vector<8x8xf32>
    %131 = arith.truncf %130 : vector<8x8xf32> to vector<8x8xbf16>
    %c0_46 = arith.constant 0 : index
    %c3 = arith.constant 3 : index
    %c0_47 = arith.constant 0 : index
    %c0_48 = arith.constant 0 : index
    %132 = vector.load %arg20[%c0_46, %c3, %c0_47, %c0_48] : memref<1x4x8x8xbf16, #tpu.memory_space<vmem>>, vector<1x1x8x8xbf16>
    %133 = vector.shape_cast %132 : vector<1x1x8x8xbf16> to vector<8x8xbf16>
    %134 = vector.shape_cast %131 : vector<8x8xbf16> to vector<1x1x8x8xbf16>
    tpu.vector_store %arg20[%c0_46, %c3, %c0_47, %c0_48], %134 {strides = array<i32>} : memref<1x4x8x8xbf16, #tpu.memory_space<vmem>>, vector<1x1x8x8xbf16>,
    %cst_49 = arith.constant dense<0.000000e+00> : vector<8x8xf32>
    %135 = tpu.matmul %130, %119, %cst_49 {dimension_numbers = #tpu.dot_dimension_numbers<[1], [0], [0], [1], [0, 0, 1, 1], [], []>} : vector<8x8xf32>, vector<8x8xf32>, vector<8x8xf32> -> vector<8x8xf32>
    %136 = tpu.concatenate %78, %97, %116, %135 in 1 : vector<8x8xf32>, vector<8x8xf32>, vector<8x8xf32>, vector<8x8xf32> -> vector<8x32xf32>
    %c0_50 = arith.constant 0 : index
    %c0_51 = arith.constant 0 : index
    %137 = vector.load %arg11[%c0_50, %c0_51] : memref<32x32xbf16, #tpu.memory_space<vmem>>, vector<32x32xbf16>
    %138 = arith.extf %137 : vector<32x32xbf16> to vector<32x32xf32>
    %cst_52 = arith.constant dense<0.000000e+00> : vector<8x32xf32>
    %139 = tpu.matmul %136, %138, %cst_52 {dimension_numbers = #tpu.dot_dimension_numbers<[1], [0], [0], [1], [0, 0, 1, 1], [], []>} : vector<8x32xf32>, vector<32x32xf32>, vector<8x32xf32> -> vector<8x32xf32>
    %c0_53 = arith.constant 0 : index
    %c0_54 = arith.constant 0 : index
    %140 = vector.load %arg12[%c0_53, %c0_54] : memref<1x32xf32, #tpu.memory_space<vmem>>, vector<1x32xf32>
    %141 = vector.shape_cast %140 : vector<1x32xf32> to vector<32xf32>
    %142 = vector.shape_cast %141 : vector<32xf32> to vector<1x32xf32>
    %143 = vector.broadcast %142 : vector<1x32xf32> to vector<8x32xf32>
    %144 = arith.addf %139, %143 : vector<8x32xf32>
    %145 = arith.addf %144, %6 : vector<8x32xf32>
    %146 = vector.broadcast %57 : vector<8x1xf32> to vector<8x32xf32>
    %147 = arith.mulf %145, %146 : vector<8x32xf32>
    %c0_55 = arith.constant 0 : index
    %c0_56 = arith.constant 0 : index
    %148 = vector.load %arg13[%c0_55, %c0_56] : memref<1x32xf32, #tpu.memory_space<vmem>>, vector<1x32xf32>
    %149 = vector.shape_cast %148 : vector<1x32xf32> to vector<32xf32>
    %c0_57 = arith.constant 0 : index
    %c0_58 = arith.constant 0 : index
    %150 = vector.load %arg14[%c0_57, %c0_58] : memref<1x32xf32, #tpu.memory_space<vmem>>, vector<1x32xf32>
    %151 = vector.shape_cast %150 : vector<1x32xf32> to vector<32xf32>
    %cst_59 = arith.constant dense<0.000000e+00> : vector<8xf32>
    %152 = vector.multi_reduction <add>, %147, %cst_59 [1] : vector<8x32xf32> to vector<8xf32>
    %153 = vector.shape_cast %152 : vector<8xf32> to vector<8x1xf32>
    %cst_60 = arith.constant 3.200000e+01 : f32
    %154 = vector.broadcast %cst_60 : f32 to vector<8x1xf32>
    %155 = arith.divf %153, %154 : vector<8x1xf32>
    %156 = vector.broadcast %155 : vector<8x1xf32> to vector<8x32xf32>
    %157 = arith.subf %147, %156 : vector<8x32xf32>
    %158 = arith.mulf %157, %157 : vector<8x32xf32>
    %cst_61 = arith.constant dense<0.000000e+00> : vector<8xf32>
    %159 = vector.multi_reduction <add>, %158, %cst_61 [1] : vector<8x32xf32> to vector<8xf32>
    %160 = vector.shape_cast %159 : vector<8xf32> to vector<8x1xf32>
    %cst_62 = arith.constant 3.200000e+01 : f32
    %161 = vector.broadcast %cst_62 : f32 to vector<8x1xf32>
    %162 = arith.divf %160, %161 : vector<8x1xf32>
    %163 = vector.broadcast %155 : vector<8x1xf32> to vector<8x32xf32>
    %164 = arith.subf %147, %163 : vector<8x32xf32>
    %cst_63 = arith.constant 9.99999997E-7 : f32
    %165 = vector.broadcast %cst_63 : f32 to vector<8x1xf32>
    %166 = arith.addf %162, %165 : vector<8x1xf32>
    %167 = math.rsqrt %166 : vector<8x1xf32>
    %168 = vector.broadcast %167 : vector<8x1xf32> to vector<8x32xf32>
    %169 = arith.mulf %164, %168 : vector<8x32xf32>
    %170 = vector.shape_cast %149 : vector<32xf32> to vector<1x32xf32>
    %171 = vector.broadcast %170 : vector<1x32xf32> to vector<8x32xf32>
    %172 = arith.mulf %169, %171 : vector<8x32xf32>
    %173 = vector.shape_cast %151 : vector<32xf32> to vector<1x32xf32>
    %174 = vector.broadcast %173 : vector<1x32xf32> to vector<8x32xf32>
    %175 = arith.addf %172, %174 : vector<8x32xf32>
    %c0_64 = arith.constant 0 : index
    %c0_65 = arith.constant 0 : index
    %176 = vector.load %arg15[%c0_64, %c0_65] : memref<32x64xbf16, #tpu.memory_space<vmem>>, vector<32x64xbf16>
    %177 = arith.extf %176 : vector<32x64xbf16> to vector<32x64xf32>
    %cst_66 = arith.constant dense<0.000000e+00> : vector<8x64xf32>
    %178 = tpu.matmul %175, %177, %cst_66 {dimension_numbers = #tpu.dot_dimension_numbers<[1], [0], [0], [1], [0, 0, 1, 1], [], []>} : vector<8x32xf32>, vector<32x64xf32>, vector<8x64xf32> -> vector<8x64xf32>
    %c0_67 = arith.constant 0 : index
    %c0_68 = arith.constant 0 : index
    %179 = vector.load %arg16[%c0_67, %c0_68] : memref<1x64xf32, #tpu.memory_space<vmem>>, vector<1x64xf32>
    %180 = vector.shape_cast %179 : vector<1x64xf32> to vector<64xf32>
    %181 = vector.shape_cast %180 : vector<64xf32> to vector<1x64xf32>
    %182 = vector.broadcast %181 : vector<1x64xf32> to vector<8x64xf32>
    %183 = arith.addf %178, %182 : vector<8x64xf32>
    %cst_69 = arith.constant 5.000000e-01 : f32
    %184 = vector.broadcast %cst_69 : f32 to vector<8x64xf32>
    %185 = arith.mulf %184, %183 : vector<8x64xf32>
    %cst_70 = arith.constant 4.471500e-02 : f32
    %186 = vector.broadcast %cst_70 : f32 to vector<8x64xf32>
    %187 = arith.mulf %186, %183 : vector<8x64xf32>
    %188 = arith.mulf %187, %183 : vector<8x64xf32>
    %189 = arith.mulf %188, %183 : vector<8x64xf32>
    %190 = arith.addf %183, %189 : vector<8x64xf32>
    %cst_71 = arith.constant 0.797884583 : f32
    %191 = vector.broadcast %cst_71 : f32 to vector<8x64xf32>
    %192 = arith.mulf %191, %190 : vector<8x64xf32>
    %193 = math.tanh %192 : vector<8x64xf32>
    %cst_72 = arith.constant 1.000000e+00 : f32
    %194 = vector.broadcast %cst_72 : f32 to vector<8x64xf32>
    %195 = arith.addf %194, %193 : vector<8x64xf32>
    %196 = arith.mulf %185, %195 : vector<8x64xf32>
    %c0_73 = arith.constant 0 : index
    %c0_74 = arith.constant 0 : index
    %197 = vector.load %arg17[%c0_73, %c0_74] : memref<64x32xbf16, #tpu.memory_space<vmem>>, vector<64x32xbf16>
    %198 = arith.extf %197 : vector<64x32xbf16> to vector<64x32xf32>
    %cst_75 = arith.constant dense<0.000000e+00> : vector<8x32xf32>
    %199 = tpu.matmul %196, %198, %cst_75 {dimension_numbers = #tpu.dot_dimension_numbers<[1], [0], [0], [1], [0, 0, 1, 1], [], []>} : vector<8x64xf32>, vector<64x32xf32>, vector<8x32xf32> -> vector<8x32xf32>
    %c0_76 = arith.constant 0 : index
    %c0_77 = arith.constant 0 : index
    %200 = vector.load %arg18[%c0_76, %c0_77] : memref<1x32xf32, #tpu.memory_space<vmem>>, vector<1x32xf32>
    %201 = vector.shape_cast %200 : vector<1x32xf32> to vector<32xf32>
    %202 = vector.shape_cast %201 : vector<32xf32> to vector<1x32xf32>
    %203 = vector.broadcast %202 : vector<1x32xf32> to vector<8x32xf32>
    %204 = arith.addf %199, %203 : vector<8x32xf32>
    %205 = arith.addf %204, %147 : vector<8x32xf32>
    %206 = vector.broadcast %57 : vector<8x1xf32> to vector<8x32xf32>
    %207 = arith.mulf %205, %206 : vector<8x32xf32>
    %c0_78 = arith.constant 0 : index
    %c0_79 = arith.constant 0 : index
    %c0_80 = arith.constant 0 : index
    %208 = vector.load %arg19[%c0_78, %c0_79, %c0_80] : memref<1x8x32xf32, #tpu.memory_space<vmem>>, vector<1x8x32xf32>
    %209 = vector.shape_cast %208 : vector<1x8x32xf32> to vector<8x32xf32>
    %210 = vector.shape_cast %207 : vector<8x32xf32> to vector<1x8x32xf32>
    tpu.vector_store %arg19[%c0_78, %c0_79, %c0_80], %210 {strides = array<i32>} : memref<1x8x32xf32, #tpu.memory_space<vmem>>, vector<1x8x32xf32>,
    return
  }
  func.func @transform_0(%arg0: i32, %arg1: i32, %arg2: memref<2xi32, #tpu.memory_space<smem>>) -> (i32, i32, i32) {
    %c0_i32 = arith.constant 0 : i32
    %c0_i32_0 = arith.constant 0 : i32
    return %arg0, %arg1, %c0_i32 : i32, i32, i32
  }
  func.func @transform_1(%arg0: i32, %arg1: i32, %arg2: memref<2xi32, #tpu.memory_space<smem>>) -> (i32, i32, i32) {
    %c0_i32 = arith.constant 0 : i32
    %c0_i32_0 = arith.constant 0 : i32
    %c0_i32_1 = arith.constant 0 : i32
    return %arg0, %c0_i32, %c0_i32_0 : i32, i32, i32
  }
  func.func @transform_2(%arg0: i32, %arg1: i32, %arg2: memref<2xi32, #tpu.memory_space<smem>>) -> (i32, i32, i32) {
    %c0_i32 = arith.constant 0 : i32
    %c0_i32_0 = arith.constant 0 : i32
    %c0_i32_1 = arith.constant 0 : i32
    return %arg0, %c0_i32, %c0_i32_0 : i32, i32, i32
  }
  func.func @transform_3(%arg0: i32, %arg1: i32, %arg2: memref<2xi32, #tpu.memory_space<smem>>) -> (i32, i32) {
    %c0_i32 = arith.constant 0 : i32
    %c0_i32_0 = arith.constant 0 : i32
    %c0_i32_1 = arith.constant 0 : i32
    return %c0_i32, %c0_i32_0 : i32, i32
  }
  func.func @transform_4(%arg0: i32, %arg1: i32, %arg2: memref<2xi32, #tpu.memory_space<smem>>) -> (i32, i32) {
    %c0_i32 = arith.constant 0 : i32
    %c0_i32_0 = arith.constant 0 : i32
    %c0_i32_1 = arith.constant 0 : i32
    return %c0_i32, %c0_i32_0 : i32, i32
  }
  func.func @transform_5(%arg0: i32, %arg1: i32, %arg2: memref<2xi32, #tpu.memory_space<smem>>) -> (i32, i32) {
    %c0_i32 = arith.constant 0 : i32
    %c0_i32_0 = arith.constant 0 : i32
    %c0_i32_1 = arith.constant 0 : i32
    return %c0_i32, %c0_i32_0 : i32, i32
  }
  func.func @transform_6(%arg0: i32, %arg1: i32, %arg2: memref<2xi32, #tpu.memory_space<smem>>) -> (i32, i32) {
    %c0_i32 = arith.constant 0 : i32
    %c0_i32_0 = arith.constant 0 : i32
    %c0_i32_1 = arith.constant 0 : i32
    return %c0_i32, %c0_i32_0 : i32, i32
  }
  func.func @transform_7(%arg0: i32, %arg1: i32, %arg2: memref<2xi32, #tpu.memory_space<smem>>) -> (i32, i32) {
    %c0_i32 = arith.constant 0 : i32
    %c0_i32_0 = arith.constant 0 : i32
    %c0_i32_1 = arith.constant 0 : i32
    return %c0_i32, %c0_i32_0 : i32, i32
  }
  func.func @transform_8(%arg0: i32, %arg1: i32, %arg2: memref<2xi32, #tpu.memory_space<smem>>) -> (i32, i32) {
    %c0_i32 = arith.constant 0 : i32
    %c0_i32_0 = arith.constant 0 : i32
    %c0_i32_1 = arith.constant 0 : i32
    return %c0_i32, %c0_i32_0 : i32, i32
  }
  func.func @transform_9(%arg0: i32, %arg1: i32, %arg2: memref<2xi32, #tpu.memory_space<smem>>) -> (i32, i32) {
    %c0_i32 = arith.constant 0 : i32
    %c0_i32_0 = arith.constant 0 : i32
    %c0_i32_1 = arith.constant 0 : i32
    return %c0_i32, %c0_i32_0 : i32, i32
  }
  func.func @transform_10(%arg0: i32, %arg1: i32, %arg2: memref<2xi32, #tpu.memory_space<smem>>) -> (i32, i32) {
    %c0_i32 = arith.constant 0 : i32
    %c0_i32_0 = arith.constant 0 : i32
    %c0_i32_1 = arith.constant 0 : i32
    return %c0_i32, %c0_i32_0 : i32, i32
  }
  func.func @transform_11(%arg0: i32, %arg1: i32, %arg2: memref<2xi32, #tpu.memory_space<smem>>) -> (i32, i32) {
    %c0_i32 = arith.constant 0 : i32
    %c0_i32_0 = arith.constant 0 : i32
    %c0_i32_1 = arith.constant 0 : i32
    return %c0_i32, %c0_i32_0 : i32, i32
  }
  func.func @transform_12(%arg0: i32, %arg1: i32, %arg2: memref<2xi32, #tpu.memory_space<smem>>) -> (i32, i32) {
    %c0_i32 = arith.constant 0 : i32
    %c0_i32_0 = arith.constant 0 : i32
    %c0_i32_1 = arith.constant 0 : i32
    return %c0_i32, %c0_i32_0 : i32, i32
  }
  func.func @transform_13(%arg0: i32, %arg1: i32, %arg2: memref<2xi32, #tpu.memory_space<smem>>) -> (i32, i32) {
    %c0_i32 = arith.constant 0 : i32
    %c0_i32_0 = arith.constant 0 : i32
    %c0_i32_1 = arith.constant 0 : i32
    return %c0_i32, %c0_i32_0 : i32, i32
  }
  func.func @transform_14(%arg0: i32, %arg1: i32, %arg2: memref<2xi32, #tpu.memory_space<smem>>) -> (i32, i32) {
    %c0_i32 = arith.constant 0 : i32
    %c0_i32_0 = arith.constant 0 : i32
    %c0_i32_1 = arith.constant 0 : i32
    return %c0_i32, %c0_i32_0 : i32, i32
  }
  func.func @transform_15(%arg0: i32, %arg1: i32, %arg2: memref<2xi32, #tpu.memory_space<smem>>) -> (i32, i32) {
    %c0_i32 = arith.constant 0 : i32
    %c0_i32_0 = arith.constant 0 : i32
    %c0_i32_1 = arith.constant 0 : i32
    return %c0_i32, %c0_i32_0 : i32, i32
  }
  func.func @transform_16(%arg0: i32, %arg1: i32, %arg2: memref<2xi32, #tpu.memory_space<smem>>) -> (i32, i32, i32) {
    %c0_i32 = arith.constant 0 : i32
    %c0_i32_0 = arith.constant 0 : i32
    return %arg0, %arg1, %c0_i32 : i32, i32, i32
  }
  func.func @transform_17(%arg0: i32, %arg1: i32, %arg2: memref<2xi32, #tpu.memory_space<smem>>) -> (i32, i32, i32, i32) {
    %c0_i32 = arith.constant 0 : i32
    %c0_i32_0 = arith.constant 0 : i32
    %c0_i32_1 = arith.constant 0 : i32
    return %arg0, %c0_i32, %arg1, %c0_i32_0 : i32, i32, i32, i32
  }
}

</mosaic_0001>

<llo_original>
// kernel: tpu_custom_call.1
$region0: #{tpu_custom_call.1}
  #allocation0 [shape = 'u32[]', space=smem, size = 0x4, offset = 0x4, fixed_abs, tag = 'smem constant byte address 0x4 - core index']
  #allocation1 [shape = 'u32[144,128]{1,0:T(1,128)}', space=vmem, size = 0x12000, scoped, tag = 'internal scratch']
  #allocation2 [shape = 'f32[8,32]{1,0:T(8,128)}', space=vmem, size = 0x1000, scoped, tag = 'scratch operand']
  #allocation3 [shape = 'f32[8,32]{1,0:T(8,128)}', space=vmem, size = 0x1000, scoped, tag = 'scratch operand']
  #allocation4 [shape = 's32[1]{0}', space=sflag, size = 0x4, scoped, tag = 'scoped memory for tpu_custom_call.1']
  #allocation5 [shape = 'u8[512]{0}', space=smem, size = 0x200, scoped, tag = 'prefetched SMEM operand 0']
  %s0 = inlined_call_operand.hbm [shape: s32[2], index: 0, kind: input, shape index: {}]
  %s1 = inlined_call_operand.vmem [shape: f32[2,8,32], index: 1, kind: input, shape index: {}]
  %s2 = inlined_call_operand.hbm [shape: bf16[2,8,32], index: 2, kind: input, shape index: {}]
  %s3 = inlined_call_operand.hbm [shape: bf16[2,8,32], index: 3, kind: input, shape index: {}]
  %s4 = inlined_call_operand.vmem [shape: f32[1,32], index: 4, kind: input, shape index: {}]
  %s5 = inlined_call_operand.vmem [shape: f32[1,32], index: 5, kind: input, shape index: {}]
  %s6 = inlined_call_operand.vmem [shape: bf16[32,32], index: 6, kind: input, shape index: {}]
  %s7 = inlined_call_operand.vmem [shape: bf16[32,32], index: 7, kind: input, shape index: {}]
  %s8 = inlined_call_operand.hbm [shape: bf16[32,32], index: 8, kind: input, shape index: {}]
  %s9 = inlined_call_operand.hbm [shape: bf16[32,32], index: 9, kind: input, shape index: {}]
  %s10 = inlined_call_operand.vmem [shape: f32[1,32], index: 10, kind: input, shape index: {}]
  %s11 = inlined_call_operand.vmem [shape: f32[1,32], index: 11, kind: input, shape index: {}]
  %s12 = inlined_call_operand.vmem [shape: f32[1,32], index: 12, kind: input, shape index: {}]
  %s13 = inlined_call_operand.hbm [shape: bf16[32,64], index: 13, kind: input, shape index: {}]
  %s14 = inlined_call_operand.vmem [shape: f32[1,64], index: 14, kind: input, shape index: {}]
  %s15 = inlined_call_operand.vmem [shape: bf16[64,32], index: 15, kind: input, shape index: {}]
  %s16 = inlined_call_operand.vmem [shape: f32[1,32], index: 16, kind: input, shape index: {}]
  %s17 = inlined_call_operand.hbm [shape: f32[2,8,32], index: 17, kind: output, shape index: {0}]
  %s18 = inlined_call_operand.hbm [shape: bf16[2,4,8,8], index: 18, kind: output, shape index: {1}]
  %19 = xla_tuple %s17, %s18
  %s20 = sld [smem:[#allocation0]]
  $region129: #{tpu_custom_call.1} parent=0
    _
  %s22 = ssub.s32 1, %s20
  %s23 = scalar_select 0, %s22, %s20
  %25 = dma.hbm_to_smem %s0, 16, [#allocation5], [#allocation4]
  %26 = dma.done [#allocation4], 16
  %27 = sfence
  $region1: #{tpu_custom_call.1} parent=0
    #allocation6 [shape = 'u8[4096]{0}', space=vmem, size = 0x1000, scoped, tag = 'input window, operand 2']
    #allocation7 [shape = 's32[2]{0}', space=sflag, size = 0x8, scoped, tag = 'scoped memory for tpu_custom_call.1']
    #allocation8 [shape = 's32[2]{0}', space=sflag, size = 0x8, scoped, tag = 'scoped memory for tpu_custom_call.1']
    #allocation9 [shape = 'u8[4096]{0}', space=vmem, size = 0x1000, scoped, tag = 'input window, operand 3']
    #allocation10 [shape = 's32[2]{0}', space=sflag, size = 0x8, scoped, tag = 'scoped memory for tpu_custom_call.1']
    #allocation11 [shape = 'u8[8192]{0}', space=vmem, size = 0x2000, scoped, tag = 'input window, operand 8, single buffered']
    #allocation12 [shape = 'u8[8192]{0}', space=vmem, size = 0x2000, scoped, tag = 'input window, operand 9, single buffered']
    #allocation13 [shape = 's32[1]{0}', space=sflag, size = 0x4, scoped, tag = 'scoped memory for tpu_custom_call.1']
    #allocation14 [shape = 'u8[8192]{0}', space=vmem, size = 0x2000, scoped, tag = 'input window, operand 13, single buffered']
    #allocation15 [shape = 'u8[8192]{0}', space=vmem, size = 0x2000, scoped, tag = 'output window, operand 0']
    #allocation16 [shape = 'u8[16384]{0}', space=vmem, size = 0x4000, scoped, tag = 'output window, operand 1']
    #allocation17 [shape = 's32[2]{0}', space=sflag, size = 0x8, scoped, tag = 'scoped memory for tpu_custom_call.1']
    %28 = vsyncpa [#allocation7], 0
    %s29 = scalar_lea.sflag [#allocation7], 1
    %30 = vsyncpa %s29, 0
    %31 = vsyncpa [#allocation10], 0
    %s32 = scalar_lea.sflag [#allocation10], 1
    %33 = vsyncpa %s32, 0
    %34 = vsyncpa [#allocation13], 0
    %35 = vsyncpa [#allocation8], 0
    %s36 = scalar_lea.sflag [#allocation8], 1
    %37 = vsyncpa %s36, 0
    %38 = vsyncpa [#allocation17], 0
    %s39 = scalar_lea.sflag [#allocation17], 1
    %40 = vsyncpa %s39, 0
    loop: start=0, step=1, limit=4
    $region2: #{tpu_custom_call.1} parent=1 // loop_pre_header
      _
    $region3: #{tpu_custom_call.1} parent=1 // loop_header
      %s42 = sphi 0, %s46
      %p43 = scmp.ge.s32.totalorder %s42, 4
      %s49 = sphi 0, %s61
      %s50 = sphi 0, %s57
      %s51 = sphi 0, %s49
      %s52 = sphi 0, %s50
      %s53 = sphi 0, %s51
      %s54 = sphi 0, %s52
      %s66 = sphi 0, %s68
      %s69 = sphi 0, %s66
      %s70 = sphi 0, %s69
      %s86 = sphi 0, %s70
      %s92 = sphi 0, %s94
      %s95 = sphi 0, %s92
      %s96 = sphi 0, %s95
      %s112 = sphi 0, %s96
      %s118 = sphi 0, %s120
      %s121 = sphi 0, %s118
      %s122 = sphi 0, %s121
      %s138 = sphi 0, %s122
      %s142 = sphi 0, %s142
      %s144 = sphi 0, %s142
      %s145 = sphi 0, %s144
      %s159 = sphi 0, %s145
      %s163 = sphi 0, %s163
      %s165 = sphi 0, %s163
      %s166 = sphi 0, %s165
      %s180 = sphi 0, %s166
      %s184 = sphi 0, %s184
      %s186 = sphi 0, %s184
      %s187 = sphi 0, %s186
      %s201 = sphi 0, %s187
      %s205 = sphi 0, %s205
      %s207 = sphi 0, %s205
      %s208 = sphi 0, %s207
      %s222 = sphi 0, %s208
      %s226 = sphi 0, %s226
      %s228 = sphi 0, %s226
      %s229 = sphi 0, %s228
      %s243 = sphi 0, %s229
      %s247 = sphi 0, %s247
      %s249 = sphi 0, %s247
      %s250 = sphi 0, %s249
      %s264 = sphi 0, %s250
      %s268 = sphi 0, %s268
      %s270 = sphi 0, %s268
      %s271 = sphi 0, %s270
      %s285 = sphi 0, %s271
      %s289 = sphi 0, %s289
      %s291 = sphi 0, %s289
      %s292 = sphi 0, %s291
      %s306 = sphi 0, %s292
      %s310 = sphi 0, %s310
      %s312 = sphi 0, %s310
      %s313 = sphi 0, %s312
      %s327 = sphi 0, %s313
      %s331 = sphi 0, %s331
      %s333 = sphi 0, %s331
      %s334 = sphi 0, %s333
      %s348 = sphi 0, %s334
      %s352 = sphi 0, %s352
      %s354 = sphi 0, %s352
      %s355 = sphi 0, %s354
      %s369 = sphi 0, %s355
      %s373 = sphi 0, %s373
      %s375 = sphi 0, %s373
      %s376 = sphi 0, %s375
      %s390 = sphi 0, %s376
      %s394 = sphi 0, %s394
      %s396 = sphi 0, %s394
      %s397 = sphi 0, %s396
      %s411 = sphi 0, %s397
      %s419 = sphi 0, %s421
      %s422 = sphi 0, %s419
      %s423 = sphi 0, %s422
      %s439 = sphi 0, %s423
      %s447 = sphi 0, %s449
      %s450 = sphi 0, %s447
      %s451 = sphi 0, %s450
      %s467 = sphi 0, %s451
    $region4: #{tpu_custom_call.1} parent=1 // loop_header_branch
      %45 = sbr.rel (%p43) target = $region8
    $region5: #{tpu_custom_call.1} parent=1 // loop_body
      %s47 = ssub.s32 %s42, 1
      %s48 = ssub.s32 %s42, 2
      %s55 = sadd.s32 1, %s50
      %p56 = scmp.ge.s32.totalorder %s55, 1
      %s57 = scalar_select %p56, 0, %s55
      %s58 = sadd.s32 1, %s49
      %s59 = scalar_select %p56, %s58, %s49
      %p60 = scmp.ge.s32.totalorder %s59, 2
      %s61 = scalar_select %p60, 0, %s59
      %s62 = ssub.s32 %s49, %s61
      %s63 = ssub.s32 %s50, %s57
      %s64 = sor.u32 %s62, %s63
      %p65 = scmp.eq.s32.totalorder %s64, 0
      %s67 = sadd.s32 %s66, 1
      %s68 = scalar_select %p65, %s66, %s67
      %p71 = pneg %p65
      %p72 = scmp.eq.s32.totalorder %s42, 1
      %p73 = por %p71, %p72
      %p74 = scmp.ne.s32.totalorder %s66, %s69
      %p75 = scmp.eq.s32.totalorder %s42, 0
      %p76 = por %p74, %p75
      %p77 = scmp.ne.s32.totalorder %s66, %s69
      %p78 = scmp.eq.s32.totalorder %s47, 1
      %p79 = por %p77, %p78
      %p80 = scmp.ne.s32.totalorder %s69, %s70
      %p81 = scmp.eq.s32.totalorder %s47, 0
      %p82 = por %p80, %p81
      %p83 = scmp.ne.s32.totalorder %s69, %s70
      %p84 = scmp.eq.s32.totalorder %s48, 1
      %p85 = por %p83, %p84
      %p87 = scmp.ne.s32.totalorder %s70, %s86
      %p88 = scmp.eq.s32.totalorder %s48, 0
      %p89 = por %p87, %p88
      %s90 = ssub.s32 %s49, %s61
      %p91 = scmp.eq.s32.totalorder %s90, 0
      %s93 = sadd.s32 %s92, 1
      %s94 = scalar_select %p91, %s92, %s93
      %p97 = pneg %p91
      %p98 = scmp.eq.s32.totalorder %s42, 1
      %p99 = por %p97, %p98
      %p100 = scmp.ne.s32.totalorder %s92, %s95
      %p101 = scmp.eq.s32.totalorder %s42, 0
      %p102 = por %p100, %p101
      %p103 = scmp.ne.s32.totalorder %s92, %s95
      %p104 = scmp.eq.s32.totalorder %s47, 1
      %p105 = por %p103, %p104
      %p106 = scmp.ne.s32.totalorder %s95, %s96
      %p107 = scmp.eq.s32.totalorder %s47, 0
      %p108 = por %p106, %p107
      %p109 = scmp.ne.s32.totalorder %s95, %s96
      %p110 = scmp.eq.s32.totalorder %s48, 1
      %p111 = por %p109, %p110
      %p113 = scmp.ne.s32.totalorder %s96, %s112
      %p114 = scmp.eq.s32.totalorder %s48, 0
      %p115 = por %p113, %p114
      %s116 = ssub.s32 %s49, %s61
      %p117 = scmp.eq.s32.totalorder %s116, 0
      %s119 = sadd.s32 %s118, 1
      %s120 = scalar_select %p117, %s118, %s119
      %p123 = pneg %p117
      %p124 = scmp.eq.s32.totalorder %s42, 1
      %p125 = por %p123, %p124
      %p126 = scmp.ne.s32.totalorder %s118, %s121
      %p127 = scmp.eq.s32.totalorder %s42, 0
      %p128 = por %p126, %p127
      %p129 = scmp.ne.s32.totalorder %s118, %s121
      %p130 = scmp.eq.s32.totalorder %s47, 1
      %p131 = por %p129, %p130
      %p132 = scmp.ne.s32.totalorder %s121, %s122
      %p133 = scmp.eq.s32.totalorder %s47, 0
      %p134 = por %p132, %p133
      %p135 = scmp.ne.s32.totalorder %s121, %s122
      %p136 = scmp.eq.s32.totalorder %s48, 1
      %p137 = por %p135, %p136
      %p139 = scmp.ne.s32.totalorder %s122, %s138
      %p140 = scmp.eq.s32.totalorder %s48, 0
      %p141 = por %p139, %p140
      %s143 = sadd.s32 %s142, 1
      %p146 = scmp.eq.s32.totalorder %s42, 1
      %p147 = scmp.ne.s32.totalorder %s142, %s144
      %p148 = scmp.eq.s32.totalorder %s42, 0
      %p149 = por %p147, %p148
      %p150 = scmp.ne.s32.totalorder %s142, %s144
      %p151 = scmp.eq.s32.totalorder %s47, 1
      %p152 = por %p150, %p151
      %p153 = scmp.ne.s32.totalorder %s144, %s145
      %p154 = scmp.eq.s32.totalorder %s47, 0
      %p155 = por %p153, %p154
      %p156 = scmp.ne.s32.totalorder %s144, %s145
      %p157 = scmp.eq.s32.totalorder %s48, 1
      %p158 = por %p156, %p157
      %p160 = scmp.ne.s32.totalorder %s145, %s159
      %p161 = scmp.eq.s32.totalorder %s48, 0
      %p162 = por %p160, %p161
      %s164 = sadd.s32 %s163, 1
      %p167 = scmp.eq.s32.totalorder %s42, 1
      %p168 = scmp.ne.s32.totalorder %s163, %s165
      %p169 = scmp.eq.s32.totalorder %s42, 0
      %p170 = por %p168, %p169
      %p171 = scmp.ne.s32.totalorder %s163, %s165
      %p172 = scmp.eq.s32.totalorder %s47, 1
      %p173 = por %p171, %p172
      %p174 = scmp.ne.s32.totalorder %s165, %s166
      %p175 = scmp.eq.s32.totalorder %s47, 0
      %p176 = por %p174, %p175
      %p177 = scmp.ne.s32.totalorder %s165, %s166
      %p178 = scmp.eq.s32.totalorder %s48, 1
      %p179 = por %p177, %p178
      %p181 = scmp.ne.s32.totalorder %s166, %s180
      %p182 = scmp.eq.s32.totalorder %s48, 0
      %p183 = por %p181, %p182
      %s185 = sadd.s32 %s184, 1
      %p188 = scmp.eq.s32.totalorder %s42, 1
      %p189 = scmp.ne.s32.totalorder %s184, %s186
      %p190 = scmp.eq.s32.totalorder %s42, 0
      %p191 = por %p189, %p190
      %p192 = scmp.ne.s32.totalorder %s184, %s186
      %p193 = scmp.eq.s32.totalorder %s47, 1
      %p194 = por %p192, %p193
      %p195 = scmp.ne.s32.totalorder %s186, %s187
      %p196 = scmp.eq.s32.totalorder %s47, 0
      %p197 = por %p195, %p196
      %p198 = scmp.ne.s32.totalorder %s186, %s187
      %p199 = scmp.eq.s32.totalorder %s48, 1
      %p200 = por %p198, %p199
      %p202 = scmp.ne.s32.totalorder %s187, %s201
      %p203 = scmp.eq.s32.totalorder %s48, 0
      %p204 = por %p202, %p203
      %s206 = sadd.s32 %s205, 1
      %p209 = scmp.eq.s32.totalorder %s42, 1
      %p210 = scmp.ne.s32.totalorder %s205, %s207
      %p211 = scmp.eq.s32.totalorder %s42, 0
      %p212 = por %p210, %p211
      %p213 = scmp.ne.s32.totalorder %s205, %s207
      %p214 = scmp.eq.s32.totalorder %s47, 1
      %p215 = por %p213, %p214
      %p216 = scmp.ne.s32.totalorder %s207, %s208
      %p217 = scmp.eq.s32.totalorder %s47, 0
      %p218 = por %p216, %p217
      %p219 = scmp.ne.s32.totalorder %s207, %s208
      %p220 = scmp.eq.s32.totalorder %s48, 1
      %p221 = por %p219, %p220
      %p223 = scmp.ne.s32.totalorder %s208, %s222
      %p224 = scmp.eq.s32.totalorder %s48, 0
      %p225 = por %p223, %p224
      %s227 = sadd.s32 %s226, 1
      %p230 = scmp.eq.s32.totalorder %s42, 1
      %p231 = scmp.ne.s32.totalorder %s226, %s228
      %p232 = scmp.eq.s32.totalorder %s42, 0
      %p233 = por %p231, %p232
      %p234 = scmp.ne.s32.totalorder %s226, %s228
      %p235 = scmp.eq.s32.totalorder %s47, 1
      %p236 = por %p234, %p235
      %p237 = scmp.ne.s32.totalorder %s228, %s229
      %p238 = scmp.eq.s32.totalorder %s47, 0
      %p239 = por %p237, %p238
      %p240 = scmp.ne.s32.totalorder %s228, %s229
      %p241 = scmp.eq.s32.totalorder %s48, 1
      %p242 = por %p240, %p241
      %p244 = scmp.ne.s32.totalorder %s229, %s243
      %p245 = scmp.eq.s32.totalorder %s48, 0
      %p246 = por %p244, %p245
      %s248 = sadd.s32 %s247, 1
      %p251 = scmp.eq.s32.totalorder %s42, 1
      %p252 = scmp.ne.s32.totalorder %s247, %s249
      %p253 = scmp.eq.s32.totalorder %s42, 0
      %p254 = por %p252, %p253
      %p255 = scmp.ne.s32.totalorder %s247, %s249
      %p256 = scmp.eq.s32.totalorder %s47, 1
      %p257 = por %p255, %p256
      %p258 = scmp.ne.s32.totalorder %s249, %s250
      %p259 = scmp.eq.s32.totalorder %s47, 0
      %p260 = por %p258, %p259
      %p261 = scmp.ne.s32.totalorder %s249, %s250
      %p262 = scmp.eq.s32.totalorder %s48, 1
      %p263 = por %p261, %p262
      %p265 = scmp.ne.s32.totalorder %s250, %s264
      %p266 = scmp.eq.s32.totalorder %s48, 0
      %p267 = por %p265, %p266
      %s269 = sadd.s32 %s268, 1
      %p272 = scmp.eq.s32.totalorder %s42, 1
      %p273 = scmp.ne.s32.totalorder %s268, %s270
      %p274 = scmp.eq.s32.totalorder %s42, 0
      %p275 = por %p273, %p274
      %p276 = scmp.ne.s32.totalorder %s268, %s270
      %p277 = scmp.eq.s32.totalorder %s47, 1
      %p278 = por %p276, %p277
      %p279 = scmp.ne.s32.totalorder %s270, %s271
      %p280 = scmp.eq.s32.totalorder %s47, 0
      %p281 = por %p279, %p280
      %p282 = scmp.ne.s32.totalorder %s270, %s271
      %p283 = scmp.eq.s32.totalorder %s48, 1
      %p284 = por %p282, %p283
      %p286 = scmp.ne.s32.totalorder %s271, %s285
      %p287 = scmp.eq.s32.totalorder %s48, 0
      %p288 = por %p286, %p287
      %s290 = sadd.s32 %s289, 1
      %p293 = scmp.eq.s32.totalorder %s42, 1
      %p294 = scmp.ne.s32.totalorder %s289, %s291
      %p295 = scmp.eq.s32.totalorder %s42, 0
      %p296 = por %p294, %p295
      %p297 = scmp.ne.s32.totalorder %s289, %s291
      %p298 = scmp.eq.s32.totalorder %s47, 1
      %p299 = por %p297, %p298
      %p300 = scmp.ne.s32.totalorder %s291, %s292
      %p301 = scmp.eq.s32.totalorder %s47, 0
      %p302 = por %p300, %p301
      %p303 = scmp.ne.s32.totalorder %s291, %s292
      %p304 = scmp.eq.s32.totalorder %s48, 1
      %p305 = por %p303, %p304
      %p307 = scmp.ne.s32.totalorder %s292, %s306
      %p308 = scmp.eq.s32.totalorder %s48, 0
      %p309 = por %p307, %p308
      %s311 = sadd.s32 %s310, 1
      %p314 = scmp.eq.s32.totalorder %s42, 1
      %p315 = scmp.ne.s32.totalorder %s310, %s312
      %p316 = scmp.eq.s32.totalorder %s42, 0
      %p317 = por %p315, %p316
      %p318 = scmp.ne.s32.totalorder %s310, %s312
      %p319 = scmp.eq.s32.totalorder %s47, 1
      %p320 = por %p318, %p319
      %p321 = scmp.ne.s32.totalorder %s312, %s313
      %p322 = scmp.eq.s32.totalorder %s47, 0
      %p323 = por %p321, %p322
      %p324 = scmp.ne.s32.totalorder %s312, %s313
      %p325 = scmp.eq.s32.totalorder %s48, 1
      %p326 = por %p324, %p325
      %p328 = scmp.ne.s32.totalorder %s313, %s327
      %p329 = scmp.eq.s32.totalorder %s48, 0
      %p330 = por %p328, %p329
      %s332 = sadd.s32 %s331, 1
      %p335 = scmp.eq.s32.totalorder %s42, 1
      %p336 = scmp.ne.s32.totalorder %s331, %s333
      %p337 = scmp.eq.s32.totalorder %s42, 0
      %p338 = por %p336, %p337
      %p339 = scmp.ne.s32.totalorder %s331, %s333
      %p340 = scmp.eq.s32.totalorder %s47, 1
      %p341 = por %p339, %p340
      %p342 = scmp.ne.s32.totalorder %s333, %s334
      %p343 = scmp.eq.s32.totalorder %s47, 0
      %p344 = por %p342, %p343
      %p345 = scmp.ne.s32.totalorder %s333, %s334
      %p346 = scmp.eq.s32.totalorder %s48, 1
      %p347 = por %p345, %p346
      %p349 = scmp.ne.s32.totalorder %s334, %s348
      %p350 = scmp.eq.s32.totalorder %s48, 0
      %p351 = por %p349, %p350
      %s353 = sadd.s32 %s352, 1
      %p356 = scmp.eq.s32.totalorder %s42, 1
      %p357 = scmp.ne.s32.totalorder %s352, %s354
      %p358 = scmp.eq.s32.totalorder %s42, 0
      %p359 = por %p357, %p358
      %p360 = scmp.ne.s32.totalorder %s352, %s354
      %p361 = scmp.eq.s32.totalorder %s47, 1
      %p362 = por %p360, %p361
      %p363 = scmp.ne.s32.totalorder %s354, %s355
      %p364 = scmp.eq.s32.totalorder %s47, 0
      %p365 = por %p363, %p364
      %p366 = scmp.ne.s32.totalorder %s354, %s355
      %p367 = scmp.eq.s32.totalorder %s48, 1
      %p368 = por %p366, %p367
      %p370 = scmp.ne.s32.totalorder %s355, %s369
      %p371 = scmp.eq.s32.totalorder %s48, 0
      %p372 = por %p370, %p371
      %s374 = sadd.s32 %s373, 1
      %p377 = scmp.eq.s32.totalorder %s42, 1
      %p378 = scmp.ne.s32.totalorder %s373, %s375
      %p379 = scmp.eq.s32.totalorder %s42, 0
      %p380 = por %p378, %p379
      %p381 = scmp.ne.s32.totalorder %s373, %s375
      %p382 = scmp.eq.s32.totalorder %s47, 1
      %p383 = por %p381, %p382
      %p384 = scmp.ne.s32.totalorder %s375, %s376
      %p385 = scmp.eq.s32.totalorder %s47, 0
      %p386 = por %p384, %p385
      %p387 = scmp.ne.s32.totalorder %s375, %s376
      %p388 = scmp.eq.s32.totalorder %s48, 1
      %p389 = por %p387, %p388
      %p391 = scmp.ne.s32.totalorder %s376, %s390
      %p392 = scmp.eq.s32.totalorder %s48, 0
      %p393 = por %p391, %p392
      %s395 = sadd.s32 %s394, 1
      %p398 = scmp.eq.s32.totalorder %s42, 1
      %p399 = scmp.ne.s32.totalorder %s394, %s396
      %p400 = scmp.eq.s32.totalorder %s42, 0
      %p401 = por %p399, %p400
      %p402 = scmp.ne.s32.totalorder %s394, %s396
      %p403 = scmp.eq.s32.totalorder %s47, 1
      %p404 = por %p402, %p403
      %p405 = scmp.ne.s32.totalorder %s396, %s397
      %p406 = scmp.eq.s32.totalorder %s47, 0
      %p407 = por %p405, %p406
      %p408 = scmp.ne.s32.totalorder %s396, %s397
      %p409 = scmp.eq.s32.totalorder %s48, 1
      %p410 = por %p408, %p409
      %p412 = scmp.ne.s32.totalorder %s397, %s411
      %p413 = scmp.eq.s32.totalorder %s48, 0
      %p414 = por %p412, %p413
      %s415 = ssub.s32 %s49, %s61
      %s416 = ssub.s32 %s50, %s57
      %s417 = sor.u32 %s415, %s416
      %p418 = scmp.eq.s32.totalorder %s417, 0
      %s420 = sadd.s32 %s419, 1
      %s421 = scalar_select %p418, %s419, %s420
      %p424 = pneg %p418
      %p425 = scmp.eq.s32.totalorder %s42, 1
      %p426 = por %p424, %p425
      %p427 = scmp.ne.s32.totalorder %s419, %s422
      %p428 = scmp.eq.s32.totalorder %s42, 0
      %p429 = por %p427, %p428
      %p430 = scmp.ne.s32.totalorder %s419, %s422
      %p431 = scmp.eq.s32.totalorder %s47, 1
      %p432 = por %p430, %p431
      %p433 = scmp.ne.s32.totalorder %s422, %s423
      %p434 = scmp.eq.s32.totalorder %s47, 0
      %p435 = por %p433, %p434
      %p436 = scmp.ne.s32.totalorder %s422, %s423
      %p437 = scmp.eq.s32.totalorder %s48, 1
      %p438 = por %p436, %p437
      %p440 = scmp.ne.s32.totalorder %s423, %s439
      %p441 = scmp.eq.s32.totalorder %s48, 0
      %p442 = por %p440, %p441
      %s443 = ssub.s32 %s49, %s61
      %s444 = ssub.s32 %s50, %s57
      %s445 = sor.u32 %s443, %s444
      %p446 = scmp.eq.s32.totalorder %s445, 0
      %s448 = sadd.s32 %s447, 1
      %s449 = scalar_select %p446, %s447, %s448
      %p452 = pneg %p446
      %p453 = scmp.eq.s32.totalorder %s42, 1
      %p454 = por %p452, %p453
      %p455 = scmp.ne.s32.totalorder %s447, %s450
      %p456 = scmp.eq.s32.totalorder %s42, 0
      %p457 = por %p455, %p456
      %p458 = scmp.ne.s32.totalorder %s447, %s450
      %p459 = scmp.eq.s32.totalorder %s47, 1
      %p460 = por %p458, %p459
      %p461 = scmp.ne.s32.totalorder %s450, %s451
      %p462 = scmp.eq.s32.totalorder %s47, 0
      %p463 = por %p461, %p462
      %p464 = scmp.ne.s32.totalorder %s450, %s451
      %p465 = scmp.eq.s32.totalorder %s48, 1
      %p466 = por %p464, %p465
      %p468 = scmp.ne.s32.totalorder %s451, %s467
      %p469 = scmp.eq.s32.totalorder %s48, 0
      %p470 = por %p468, %p469
      %p471 = scmp.le.s32.totalorder 1, %s42
      %p472 = scmp.lt.s32.totalorder %s42, 3
      %p473 = pnand %p471, %p472
      %p474 = pneg %p473
      // Predicated region
      $region9: #{tpu_custom_call.1} parent=5 // pred_check
        _
      $region10: #{tpu_custom_call.1} parent=5 // pred_check_branch
        %476 = sbr.rel (%p473) target = $region12
      $region11: #{tpu_custom_call.1} parent=5 // pred_region
        %s477 = ssub.s32 %s42, 1
        // Predicated region
        $region13: #{tpu_custom_call.1} parent=11 // pred_check
          %p478 = pneg %p155
        $region14: #{tpu_custom_call.1} parent=11 // pred_check_branch
          %480 = sbr.rel (%p478) target = $region16
        $region15: #{tpu_custom_call.1} parent=11 // pred_region
          _
        $region16: #{tpu_custom_call.1} parent=11 // pred_fallthru
          _
        // Predicated region
        $region17: #{tpu_custom_call.1} parent=11 // pred_check
          %p481 = pneg %p176
        $region18: #{tpu_custom_call.1} parent=11 // pred_check_branch
          %483 = sbr.rel (%p481) target = $region20
        $region19: #{tpu_custom_call.1} parent=11 // pred_region
          _
        $region20: #{tpu_custom_call.1} parent=11 // pred_fallthru
          _
        // Predicated region
        $region21: #{tpu_custom_call.1} parent=11 // pred_check
          %p484 = pneg %p197
        $region22: #{tpu_custom_call.1} parent=11 // pred_check_branch
          %486 = sbr.rel (%p484) target = $region24
        $region23: #{tpu_custom_call.1} parent=11 // pred_region
          _
        $region24: #{tpu_custom_call.1} parent=11 // pred_fallthru
          _
        // Predicated region
        $region25: #{tpu_custom_call.1} parent=11 // pred_check
          %p487 = pneg %p218
        $region26: #{tpu_custom_call.1} parent=11 // pred_check_branch
          %489 = sbr.rel (%p487) target = $region28
        $region27: #{tpu_custom_call.1} parent=11 // pred_region
          _
        $region28: #{tpu_custom_call.1} parent=11 // pred_fallthru
          _
        // Predicated region
        $region29: #{tpu_custom_call.1} parent=11 // pred_check
          %p490 = pneg %p239
        $region30: #{tpu_custom_call.1} parent=11 // pred_check_branch
          %492 = sbr.rel (%p490) target = $region32
        $region31: #{tpu_custom_call.1} parent=11 // pred_region
          %s494 = ssub.s32 256, 256
          %495 = vsyncadd [#allocation10], %s494
          %s496 = sshll.u32 [#allocation11], 4
          %s497 = int_to_ptr.vmem [resolvable:$true] %s496
          %502 = dma.hbm_to_vmem [thread:$0]  %s8, 256, %s497, [#allocation10], 64, 64, 4
        $region32: #{tpu_custom_call.1} parent=11 // pred_fallthru
          _
        // Predicated region
        $region33: #{tpu_custom_call.1} parent=11 // pred_check
          %p503 = pneg %p260
        $region34: #{tpu_custom_call.1} parent=11 // pred_check_branch
          %505 = sbr.rel (%p503) target = $region36
        $region35: #{tpu_custom_call.1} parent=11 // pred_region
          %s507 = ssub.s32 256, 256
          %508 = vsyncadd [#allocation13], %s507
          %s509 = sshll.u32 [#allocation12], 4
          %s510 = int_to_ptr.vmem [resolvable:$true] %s509
          %515 = dma.hbm_to_vmem [thread:$0]  %s9, 256, %s510, [#allocation13], 64, 64, 4
        $region36: #{tpu_custom_call.1} parent=11 // pred_fallthru
          _
        // Predicated region
        $region37: #{tpu_custom_call.1} parent=11 // pred_check
          %p516 = pneg %p281
        $region38: #{tpu_custom_call.1} parent=11 // pred_check_branch
          %518 = sbr.rel (%p516) target = $region40
        $region39: #{tpu_custom_call.1} parent=11 // pred_region
          _
        $region40: #{tpu_custom_call.1} parent=11 // pred_fallthru
          _
        // Predicated region
        $region41: #{tpu_custom_call.1} parent=11 // pred_check
          %p519 = pneg %p302
        $region42: #{tpu_custom_call.1} parent=11 // pred_check_branch
          %521 = sbr.rel (%p519) target = $region44
        $region43: #{tpu_custom_call.1} parent=11 // pred_region
          _
        $region44: #{tpu_custom_call.1} parent=11 // pred_fallthru
          _
        // Predicated region
        $region45: #{tpu_custom_call.1} parent=11 // pred_check
          %p522 = pneg %p323
        $region46: #{tpu_custom_call.1} parent=11 // pred_check_branch
          %524 = sbr.rel (%p522) target = $region48
        $region47: #{tpu_custom_call.1} parent=11 // pred_region
          _
        $region48: #{tpu_custom_call.1} parent=11 // pred_fallthru
          _
        // Predicated region
        $region49: #{tpu_custom_call.1} parent=11 // pred_check
          %p525 = pneg %p344
        $region50: #{tpu_custom_call.1} parent=11 // pred_check_branch
          %527 = sbr.rel (%p525) target = $region52
        $region51: #{tpu_custom_call.1} parent=11 // pred_region
          %s529 = ssub.s32 256, 256
          %530 = vsyncadd [#allocation13], %s529
          %s531 = sshll.u32 [#allocation14], 4
          %s532 = int_to_ptr.vmem [resolvable:$true] %s531
          %537 = dma.hbm_to_vmem [thread:$0]  %s13, 256, %s532, [#allocation13], 64, 64, 4
        $region52: #{tpu_custom_call.1} parent=11 // pred_fallthru
          _
        // Predicated region
        $region53: #{tpu_custom_call.1} parent=11 // pred_check
          %p538 = pneg %p365
        $region54: #{tpu_custom_call.1} parent=11 // pred_check_branch
          %540 = sbr.rel (%p538) target = $region56
        $region55: #{tpu_custom_call.1} parent=11 // pred_region
          _
        $region56: #{tpu_custom_call.1} parent=11 // pred_fallthru
          _
        // Predicated region
        $region57: #{tpu_custom_call.1} parent=11 // pred_check
          %p541 = pneg %p386
        $region58: #{tpu_custom_call.1} parent=11 // pred_check_branch
          %543 = sbr.rel (%p541) target = $region60
        $region59: #{tpu_custom_call.1} parent=11 // pred_region
          _
        $region60: #{tpu_custom_call.1} parent=11 // pred_fallthru
          _
        // Predicated region
        $region61: #{tpu_custom_call.1} parent=11 // pred_check
          %p544 = pneg %p407
        $region62: #{tpu_custom_call.1} parent=11 // pred_check_branch
          %546 = sbr.rel (%p544) target = $region64
        $region63: #{tpu_custom_call.1} parent=11 // pred_region
          _
        $region64: #{tpu_custom_call.1} parent=11 // pred_fallthru
          _
      $region12: #{tpu_custom_call.1} parent=5 // pred_fallthru
        _
      %p547 = scmp.lt.s32.totalorder %s42, 2
      // Predicated region
      $region65: #{tpu_custom_call.1} parent=5 // pred_check
        %p548 = pneg %p547
      $region66: #{tpu_custom_call.1} parent=5 // pred_check_branch
        %550 = sbr.rel (%p548) target = $region68
      $region67: #{tpu_custom_call.1} parent=5 // pred_region
        // Predicated region
        $region69: #{tpu_custom_call.1} parent=67 // pred_check
          %p551 = pneg %p76
        $region70: #{tpu_custom_call.1} parent=67 // pred_check_branch
          %553 = sbr.rel (%p551) target = $region72
        $region71: #{tpu_custom_call.1} parent=67 // pred_region
          %p554 = scmp.lt.s32.totalorder %s49, 1
          %s555 = scalar_select %p554, %s49, 1
          %p556 = scmp.lt.s32.totalorder %s50, 0
          %s557 = scalar_select %p556, %s50, 0
          %s558 = sadd.s32 %s557, %s555
          %s559 = smul.addr %s558, 8
          %s560 = scalar_lea.vmem %s1, %s559
        $region72: #{tpu_custom_call.1} parent=67 // pred_fallthru
          _
        // Predicated region
        $region73: #{tpu_custom_call.1} parent=67 // pred_check
          %p561 = pneg %p102
        $region74: #{tpu_custom_call.1} parent=67 // pred_check_branch
          %563 = sbr.rel (%p561) target = $region76
        $region75: #{tpu_custom_call.1} parent=67 // pred_region
          %s564 = sand.u32 %s92, 1
          %s565 = scalar_lea.sflag [#allocation7], %s564
          %s566 = sand.u32 %s92, 1
          %s567 = smul.addr %s566, 4
          %s568 = scalar_lea.vmem [#allocation6], %s567
          %s570 = ssub.s32 64, 64
          %571 = vsyncadd %s565, %s570
          %s572 = smul.addr %s49, 64
          %s573 = scalar_lea.hbm %s2, %s572
          %s575 = sshll.u32 %s568, 4
          %s576 = int_to_ptr.vmem [resolvable:$true] %s575
          %578 = dma.hbm_to_vmem [thread:$0]  %s573, 64, %s576, %s565
        $region76: #{tpu_custom_call.1} parent=67 // pred_fallthru
          _
        // Predicated region
        $region77: #{tpu_custom_call.1} parent=67 // pred_check
          %p579 = pneg %p128
        $region78: #{tpu_custom_call.1} parent=67 // pred_check_branch
          %581 = sbr.rel (%p579) target = $region80
        $region79: #{tpu_custom_call.1} parent=67 // pred_region
          %s582 = sand.u32 %s42, 1
          %s583 = scalar_lea.sflag [#allocation10], %s582
          %s584 = sand.u32 %s118, 1
          %s585 = smul.addr %s584, 4
          %s586 = scalar_lea.vmem [#allocation9], %s585
          %s588 = ssub.s32 64, 64
          %589 = vsyncadd %s583, %s588
          %s590 = smul.addr %s49, 64
          %s591 = scalar_lea.hbm %s3, %s590
          %s593 = sshll.u32 %s586, 4
          %s594 = int_to_ptr.vmem [resolvable:$true] %s593
          %596 = dma.hbm_to_vmem [thread:$0]  %s591, 64, %s594, %s583
        $region80: #{tpu_custom_call.1} parent=67 // pred_fallthru
          _
      $region68: #{tpu_custom_call.1} parent=5 // pred_fallthru
        _
      %p597 = scmp.le.s32.totalorder 1, %s42
      %p598 = scmp.lt.s32.totalorder %s42, 3
      %p599 = pnand %p597, %p598
      %p600 = pneg %p599
      // Predicated region
      $region81: #{tpu_custom_call.1} parent=5 // pred_check
        _
      $region82: #{tpu_custom_call.1} parent=5 // pred_check_branch
        %602 = sbr.rel (%p599) target = $region84
      $region83: #{tpu_custom_call.1} parent=5 // pred_region
        %s603 = ssub.s32 %s42, 1
        %s604 = sand.u32 %s95, 1
        %s605 = scalar_lea.sflag [#allocation7], %s604
        %s606 = sand.u32 %s95, 1
        %s607 = smul.addr %s606, 4
        %s608 = scalar_lea.vmem [#allocation6], %s607
        // Predicated region
        $region85: #{tpu_custom_call.1} parent=83 // pred_check
          %p609 = pneg %p108
        $region86: #{tpu_custom_call.1} parent=83 // pred_check_branch
          %611 = sbr.rel (%p609) target = $region88
        $region87: #{tpu_custom_call.1} parent=83 // pred_region
          %612 = dma.done %s605, 64
        $region88: #{tpu_custom_call.1} parent=83 // pred_fallthru
          _
        %s613 = sand.u32 %s47, 1
        %s614 = scalar_lea.sflag [#allocation10], %s613
        %s615 = sand.u32 %s121, 1
        %s616 = smul.addr %s615, 4
        %s617 = scalar_lea.vmem [#allocation9], %s616
        // Predicated region
        $region89: #{tpu_custom_call.1} parent=83 // pred_check
          %p618 = pneg %p134
        $region90: #{tpu_custom_call.1} parent=83 // pred_check_branch
          %620 = sbr.rel (%p618) target = $region92
        $region91: #{tpu_custom_call.1} parent=83 // pred_region
          %621 = dma.done %s614, 64
        $region92: #{tpu_custom_call.1} parent=83 // pred_fallthru
          _
        // Predicated region
        $region93: #{tpu_custom_call.1} parent=83 // pred_check
          %p622 = pneg %p239
        $region94: #{tpu_custom_call.1} parent=83 // pred_check_branch
          %624 = sbr.rel (%p622) target = $region96
        $region95: #{tpu_custom_call.1} parent=83 // pred_region
          %625 = dma.done [#allocation10], 256
        $region96: #{tpu_custom_call.1} parent=83 // pred_fallthru
          _
        // Predicated region
        $region97: #{tpu_custom_call.1} parent=83 // pred_check
          %p626 = pneg %p260
        $region98: #{tpu_custom_call.1} parent=83 // pred_check_branch
          %628 = sbr.rel (%p626) target = $region100
        $region99: #{tpu_custom_call.1} parent=83 // pred_region
          %629 = dma.done [#allocation13], 256
        $region100: #{tpu_custom_call.1} parent=83 // pred_fallthru
          _
        // Predicated region
        $region101: #{tpu_custom_call.1} parent=83 // pred_check
          %p630 = pneg %p344
        $region102: #{tpu_custom_call.1} parent=83 // pred_check_branch
          %632 = sbr.rel (%p630) target = $region104
        $region103: #{tpu_custom_call.1} parent=83 // pred_region
          %633 = dma.done [#allocation13], 256
        $region104: #{tpu_custom_call.1} parent=83 // pred_fallthru
          _
        %p634 = scmp.lt.s32.totalorder %s51, 1
        %s635 = scalar_select %p634, %s51, 1
        %p636 = scmp.lt.s32.totalorder %s52, 0
        %s637 = scalar_select %p636, %s52, 0
        %s638 = sadd.s32 %s637, %s635
        %s639 = smul.addr %s638, 8
        %s640 = scalar_lea.vmem %s1, %s639
        %p641 = pneg %p82
        %p642 = pneg %p79
        %s643 = sand.u32 %s95, 1
        %s644 = scalar_lea.sflag [#allocation7], %s643
        %s645 = sand.u32 %s95, 1
        %s646 = smul.addr %s645, 4
        %s647 = scalar_lea.vmem [#allocation6], %s646
        %p648 = pneg %p108
        %p649 = pneg %p105
        %s650 = sand.u32 %s47, 1
        %s651 = scalar_lea.sflag [#allocation10], %s650
        %s652 = sand.u32 %s121, 1
        %s653 = smul.addr %s652, 4
        %s654 = scalar_lea.vmem [#allocation9], %s653
        %p655 = pneg %p134
        %p656 = pneg %p131
        %p657 = pneg %p155
        %p658 = pneg %p152
        %p659 = pneg %p176
        %p660 = pneg %p173
        %p661 = pneg %p197
        %p662 = pneg %p194
        %p663 = pneg %p218
        %p664 = pneg %p215
        %p665 = pneg %p239
        %p666 = pneg %p236
        %p667 = pneg %p260
        %p668 = pneg %p257
        %p669 = pneg %p281
        %p670 = pneg %p278
        %p671 = pneg %p302
        %p672 = pneg %p299
        %p673 = pneg %p323
        %p674 = pneg %p320
        %p675 = pneg %p344
        %p676 = pneg %p341
        %p677 = pneg %p365
        %p678 = pneg %p362
        %p679 = pneg %p386
        %p680 = pneg %p383
        %p681 = pneg %p407
        %p682 = pneg %p404
        %p683 = pneg %p435
        %p684 = pneg %p432
        %s685 = sand.u32 %s422, 1
        %s686 = scalar_lea.sflag [#allocation8], %s685
        %s687 = sand.u32 %s422, 1
        %s688 = smul.addr %s687, 8
        %s689 = scalar_lea.vmem [#allocation15], %s688
        %p690 = pneg %p463
        %p691 = pneg %p460
        %s692 = sand.u32 %s450, 1
        %s693 = scalar_lea.sflag [#allocation17], %s692
        %s694 = sand.u32 %s450, 1
        %s695 = smul.addr %s694, 16
        %s696 = scalar_lea.vmem [#allocation16], %s695
        %p697 = scmp.lt.s32.totalorder %s51, 1
        %s698 = scalar_select %p697, %s51, 1
        %p699 = scmp.lt.s32.totalorder %s52, 0
        %s700 = scalar_select %p699, %s52, 0
        %s701 = sadd.s32 %s700, %s698
        %s702 = smul.addr %s701, 8
        %s703 = scalar_lea.vmem %s1, %s702
        %s704 = sld [smem:[#allocation5 + %s51]]
        %p705 = scmp.eq.s32.totalorder %s52, 0
        // Predicated region
        $region105: #{tpu_custom_call.1} parent=83 // pred_check
          %p706 = pneg %p705
        $region106: #{tpu_custom_call.1} parent=83 // pred_check_branch
          %708 = sbr.rel (%p706) target = $region108
        $region107: #{tpu_custom_call.1} parent=83 // pred_region
          %v709 = vld [vmem:[%s608] sm:$0xf]
          %v710 = vunpack.c.l.bf16 %v709
          %v711 = vld [vmem:[%s617] sm:$0xf]
          %v712 = vunpack.c.l.bf16 %v711
          %v713 = vld [vmem:[%s7] sm:$0xf]
          %v714 = vld [vmem:[%s7 + $0x4] sm:$0xf]
          %v715 = vld [vmem:[%s7 + $0x8] sm:$0xf]
          %v716 = vld [vmem:[%s7 + $0xc] sm:$0xf]
          %v717 = vunpack.c.l.bf16 %v713
          %v718 = vunpack.c.l.bf16 %v714
          %v719 = vunpack.c.l.bf16 %v715
          %v720 = vunpack.c.l.bf16 %v716
          %vm721 = vcmask 261120
          %v723 = vsel %vm721, %v710, 0
          %725 = vmatprep.subr.mxu0 0.0
          %726 = vmatpush1.msra.mxu0 0.0
          %727 = vmatprep.subr.mxu0 0.0
          %728 = vmatpush1.msra.mxu0 0.0
          %729 = vmatprep.subr.mxu0 0.0
          %730 = vmatpush1.msra.mxu0 0.0
          %731 = vmatprep.subr.mxu0 0.0
          %732 = vmatpush1.msra.mxu0 0.0
          %733 = vmatprep.subr.mxu0 0.0
          %734 = vmatpush1.msra.mxu0 0.0
          %735 = vmatprep.subr.mxu0 0.0
          %736 = vmatpush1.msra.mxu0 0.0
          %737 = vmatprep.subr.mxu0 0.0
          %738 = vmatpush1.msra.mxu0 0.0
          %739 = vmatprep.subr.mxu0 0.0
          %740 = vmatpush1.msra.mxu0 0.0
          %741 = vmatprep.subr.mxu0 0.0
          %742 = vmatpush1.msra.mxu0 0.0
          %743 = vmatprep.subr.mxu0 0.0
          %744 = vmatpush1.msra.mxu0 0.0
          %745 = vmatprep.subr.mxu0 0.0
          %746 = vmatpush1.msra.mxu0 0.0
          %747 = vmatprep.subr.mxu0 0.0
          %748 = vmatpush1.msra.mxu0 0.0
          %749 = vmatprep.subr.mxu0 0.0
          %750 = vmatpush1.msra.mxu0 %v720
          %751 = vmatprep.subr.mxu0 0.0
          %752 = vmatpush1.msra.mxu0 %v719
          %753 = vmatprep.subr.mxu0 0.0
          %754 = vmatpush1.msra.mxu0 %v718
          %755 = vmatprep.subr.mxu0 0.0
          %756 = vmatpush1.msra.mxu0 %v717
          %757 = vmatprep.subr.mxu0 0.0
          %758 = vmatpush2.msra.mxu0 0.0
          %759 = vmatprep.subr.mxu0 0.0
          %760 = vmatpush2.msra.mxu0 0.0
          %761 = vmatprep.subr.mxu0 0.0
          %762 = vmatpush2.msra.mxu0 0.0
          %763 = vmatprep.subr.mxu0 0.0
          %764 = vmatpush2.msra.mxu0 0.0
          %765 = vmatprep.subr.mxu0 0.0
          %766 = vmatpush2.msra.mxu0 0.0
          %767 = vmatprep.subr.mxu0 0.0
          %768 = vmatpush2.msra.mxu0 0.0
          %769 = vmatprep.subr.mxu0 0.0
          %770 = vmatpush2.msra.mxu0 0.0
          %771 = vmatprep.subr.mxu0 0.0
          %772 = vmatpush2.msra.mxu0 0.0
          %773 = vmatprep.subr.mxu0 0.0
          %774 = vmatpush2.msra.mxu0 0.0
          %775 = vmatprep.subr.mxu0 0.0
          %776 = vmatpush2.msra.mxu0 0.0
          %777 = vmatprep.subr.mxu0 0.0
          %778 = vmatpush2.msra.mxu0 0.0
          %779 = vmatprep.subr.mxu0 0.0
          %780 = vmatpush2.msra.mxu0 0.0
          %781 = vmatprep.subr.mxu0 0.0
          %782 = vmatpush2.msra.mxu0 0.0
          %783 = vmatprep.subr.mxu0 0.0
          %784 = vmatpush2.msra.mxu0 0.0
          %785 = vmatprep.subr.mxu0 0.0
          %786 = vmatpush2.msra.mxu0 0.0
          %787 = vmatprep.subr.mxu0 0.0
          %788 = vmatpush2.msra.mxu0 0.0
          %789 = vmatprep.mubr.f32.mxu0 0.0
          %790 = vmatmul.mubr.f32.gmra.mxu0 %v723
          %v791 = vpop.f32.mrf.mxu0
          %v792 = vadd.f32 0.0, %v791
          %v793 = vpop.f32.mrf.mxu0
          %794 = vdwg.mxu0
          %795 = vst.msk [vmem:[#allocation2] sm:$0xff] %vm721, %v792
          %v796 = vld [vmem:[#allocation11] sm:$0xf]
          %v797 = vld [vmem:[#allocation11 + $0x4] sm:$0xf]
          %v798 = vld [vmem:[#allocation11 + $0x8] sm:$0xf]
          %v799 = vld [vmem:[#allocation11 + $0xc] sm:$0xf]
          %v800 = vunpack.c.l.bf16 %v796
          %v801 = vunpack.c.l.bf16 %v797
          %v802 = vunpack.c.l.bf16 %v798
          %v803 = vunpack.c.l.bf16 %v799
          %v805 = vsel %vm721, %v712, 0
          %807 = vmatprep.subr.mxu0 0.0
          %808 = vmatpush1.msra.mxu0 0.0
          %809 = vmatprep.subr.mxu0 0.0
          %810 = vmatpush1.msra.mxu0 0.0
          %811 = vmatprep.subr.mxu0 0.0
          %812 = vmatpush1.msra.mxu0 0.0
          %813 = vmatprep.subr.mxu0 0.0
          %814 = vmatpush1.msra.mxu0 0.0
          %815 = vmatprep.subr.mxu0 0.0
          %816 = vmatpush1.msra.mxu0 0.0
          %817 = vmatprep.subr.mxu0 0.0
          %818 = vmatpush1.msra.mxu0 0.0
          %819 = vmatprep.subr.mxu0 0.0
          %820 = vmatpush1.msra.mxu0 0.0
          %821 = vmatprep.subr.mxu0 0.0
          %822 = vmatpush1.msra.mxu0 0.0
          %823 = vmatprep.subr.mxu0 0.0
          %824 = vmatpush1.msra.mxu0 0.0
          %825 = vmatprep.subr.mxu0 0.0
          %826 = vmatpush1.msra.mxu0 0.0
          %827 = vmatprep.subr.mxu0 0.0
          %828 = vmatpush1.msra.mxu0 0.0
          %829 = vmatprep.subr.mxu0 0.0
          %830 = vmatpush1.msra.mxu0 0.0
          %831 = vmatprep.subr.mxu0 0.0
          %832 = vmatpush1.msra.mxu0 %v803
          %833 = vmatprep.subr.mxu0 0.0
          %834 = vmatpush1.msra.mxu0 %v802
          %835 = vmatprep.subr.mxu0 0.0
          %836 = vmatpush1.msra.mxu0 %v801
          %837 = vmatprep.subr.mxu0 0.0
          %838 = vmatpush1.msra.mxu0 %v800
          %839 = vmatprep.subr.mxu0 0.0
          %840 = vmatpush2.msra.mxu0 0.0
          %841 = vmatprep.subr.mxu0 0.0
          %842 = vmatpush2.msra.mxu0 0.0
          %843 = vmatprep.subr.mxu0 0.0
          %844 = vmatpush2.msra.mxu0 0.0
          %845 = vmatprep.subr.mxu0 0.0
          %846 = vmatpush2.msra.mxu0 0.0
          %847 = vmatprep.subr.mxu0 0.0
          %848 = vmatpush2.msra.mxu0 0.0
          %849 = vmatprep.subr.mxu0 0.0
          %850 = vmatpush2.msra.mxu0 0.0
          %851 = vmatprep.subr.mxu0 0.0
          %852 = vmatpush2.msra.mxu0 0.0
          %853 = vmatprep.subr.mxu0 0.0
          %854 = vmatpush2.msra.mxu0 0.0
          %855 = vmatprep.subr.mxu0 0.0
          %856 = vmatpush2.msra.mxu0 0.0
          %857 = vmatprep.subr.mxu0 0.0
          %858 = vmatpush2.msra.mxu0 0.0
          %859 = vmatprep.subr.mxu0 0.0
          %860 = vmatpush2.msra.mxu0 0.0
          %861 = vmatprep.subr.mxu0 0.0
          %862 = vmatpush2.msra.mxu0 0.0
          %863 = vmatprep.subr.mxu0 0.0
          %864 = vmatpush2.msra.mxu0 0.0
          %865 = vmatprep.subr.mxu0 0.0
          %866 = vmatpush2.msra.mxu0 0.0
          %867 = vmatprep.subr.mxu0 0.0
          %868 = vmatpush2.msra.mxu0 0.0
          %869 = vmatprep.subr.mxu0 0.0
          %870 = vmatpush2.msra.mxu0 0.0
          %871 = vmatprep.mubr.f32.mxu0 0.0
          %872 = vmatmul.mubr.f32.gmra.mxu0 %v805
          %v873 = vpop.f32.mrf.mxu0
          %v874 = vadd.f32 0.0, %v873
          %v875 = vpop.f32.mrf.mxu0
          %876 = vdwg.mxu0
          %877 = vst.msk [vmem:[#allocation3] sm:$0xff] %vm721, %v874
        $region108: #{tpu_custom_call.1} parent=83 // pred_fallthru
          _
        %v878 = vld [vmem:[%s703] sm:$0xff]
        %v879 = vld [vmem:[%s4] sm:$0x1]
        %v880 = vld [vmem:[%s5] sm:$0x1]
        %vm881 = vcmask 261120
        %v882 = vsel %vm881, %v878, 0.0
        %883 = vadd.xlane.f32.xlu0 %v882
        %v884 = vpop.xlane.xlu0 %883
        %v885 = vrcp.pop 32.0
        %v886 = vmul.f32 %v884, %v885
        %v887 = vsub.f32 %v878, %v886
        %v888 = vmul.f32 %v887, %v887
        %v889 = vsel %vm881, %v888, 0.0
        %890 = vadd.xlane.f32.xlu0 %v889
        %v891 = vpop.xlane.xlu0 %890
        %v892 = vmul.f32 %v891, %v885
        %v893 = vadd.f32 %v892, 1e-06
        %v894 = vrsqrt.pop %v893
        %v895 = vmul.f32 %v887, %v894
        %v897 = vlaneseq
        %v898 = vshrl.u32 %v897, 7
        %v899 = vsub.s32 0, %v898
        %v900 = vrot.slane %v879, %v899
        %v902 = vmul.f32 %v895, %v900
        %v904 = vlaneseq
        %v905 = vshrl.u32 %v904, 7
        %v906 = vsub.s32 0, %v905
        %v907 = vrot.slane %v880, %v906
        %v909 = vadd.f32 %v902, %v907
        %v910 = vld [vmem:[%s6] sm:$0xf]
        %v911 = vld [vmem:[%s6 + $0x4] sm:$0xf]
        %v912 = vld [vmem:[%s6 + $0x8] sm:$0xf]
        %v913 = vld [vmem:[%s6 + $0xc] sm:$0xf]
        %v914 = vunpack.c.l.bf16 %v910
        %v915 = vunpack.c.l.bf16 %v911
        %v916 = vunpack.c.l.bf16 %v912
        %v917 = vunpack.c.l.bf16 %v913
        %v919 = vsel %vm881, %v909, 0
        %921 = vmatprep.subr.mxu0 0.0
        %922 = vmatpush1.msra.mxu0 0.0
        %923 = vmatprep.subr.mxu0 0.0
        %924 = vmatpush1.msra.mxu0 0.0
        %925 = vmatprep.subr.mxu0 0.0
        %926 = vmatpush1.msra.mxu0 0.0
        %927 = vmatprep.subr.mxu0 0.0
        %928 = vmatpush1.msra.mxu0 0.0
        %929 = vmatprep.subr.mxu0 0.0
        %930 = vmatpush1.msra.mxu0 0.0
        %931 = vmatprep.subr.mxu0 0.0
        %932 = vmatpush1.msra.mxu0 0.0
        %933 = vmatprep.subr.mxu0 0.0
        %934 = vmatpush1.msra.mxu0 0.0
        %935 = vmatprep.subr.mxu0 0.0
        %936 = vmatpush1.msra.mxu0 0.0
        %937 = vmatprep.subr.mxu0 0.0
        %938 = vmatpush1.msra.mxu0 0.0
        %939 = vmatprep.subr.mxu0 0.0
        %940 = vmatpush1.msra.mxu0 0.0
        %941 = vmatprep.subr.mxu0 0.0
        %942 = vmatpush1.msra.mxu0 0.0
        %943 = vmatprep.subr.mxu0 0.0
        %944 = vmatpush1.msra.mxu0 0.0
        %945 = vmatprep.subr.mxu0 0.0
        %946 = vmatpush1.msra.mxu0 %v917
        %947 = vmatprep.subr.mxu0 0.0
        %948 = vmatpush1.msra.mxu0 %v916
        %949 = vmatprep.subr.mxu0 0.0
        %950 = vmatpush1.msra.mxu0 %v915
        %951 = vmatprep.subr.mxu0 0.0
        %952 = vmatpush1.msra.mxu0 %v914
        %953 = vmatprep.subr.mxu0 0.0
        %954 = vmatpush2.msra.mxu0 0.0
        %955 = vmatprep.subr.mxu0 0.0
        %956 = vmatpush2.msra.mxu0 0.0
        %957 = vmatprep.subr.mxu0 0.0
        %958 = vmatpush2.msra.mxu0 0.0
        %959 = vmatprep.subr.mxu0 0.0
        %960 = vmatpush2.msra.mxu0 0.0
        %961 = vmatprep.subr.mxu0 0.0
        %962 = vmatpush2.msra.mxu0 0.0
        %963 = vmatprep.subr.mxu0 0.0
        %964 = vmatpush2.msra.mxu0 0.0
        %965 = vmatprep.subr.mxu0 0.0
        %966 = vmatpush2.msra.mxu0 0.0
        %967 = vmatprep.subr.mxu0 0.0
        %968 = vmatpush2.msra.mxu0 0.0
        %969 = vmatprep.subr.mxu0 0.0
        %970 = vmatpush2.msra.mxu0 0.0
        %971 = vmatprep.subr.mxu0 0.0
        %972 = vmatpush2.msra.mxu0 0.0
        %973 = vmatprep.subr.mxu0 0.0
        %974 = vmatpush2.msra.mxu0 0.0
        %975 = vmatprep.subr.mxu0 0.0
        %976 = vmatpush2.msra.mxu0 0.0
        %977 = vmatprep.subr.mxu0 0.0
        %978 = vmatpush2.msra.mxu0 0.0
        %979 = vmatprep.subr.mxu0 0.0
        %980 = vmatpush2.msra.mxu0 0.0
        %981 = vmatprep.subr.mxu0 0.0
        %982 = vmatpush2.msra.mxu0 0.0
        %983 = vmatprep.subr.mxu0 0.0
        %984 = vmatpush2.msra.mxu0 0.0
        %985 = vmatprep.mubr.f32.mxu0 0.0
        %986 = vmatmul.mubr.f32.gmra.mxu0 %v919
        %v987 = vpop.f32.mrf.mxu0
        %v988 = vadd.f32 0.0, %v987
        %v989 = vpop.f32.mrf.mxu0
        %990 = vdwg.mxu0
        %s991 = smul.u32 %s52, 8
        %v992 = vlaneseq
        %v993 = vshrl.u32 %v992, 7
        %v994 = vstv %s991
        %v995 = vadd.s32 %v994, %v993
        %v996 = vlaneseq
        %v997 = vand.u32 %v996, 127
        %vm998 = vcmp.gt.s32.totalorder %v997, %v995
        %v999 = vstv %s704
        %vm1000 = vcmp.ge.s32.totalorder %v997, %v999
        %vm1001 = vmor %vm998, %vm1000
        %v1002 = vsel %vm1001, -1e+09, 0.0
        %vm1003 = vcmp.lt.s32.totalorder %v995, %v999
        %v1004 = vsel %vm1003, 1, 0
        %v1005 = vcvt.s32.f32 %v1004
        %v1006 = vld [vmem:[#allocation2] sm:$0xff]
        %v1007 = vld [vmem:[#allocation3] sm:$0xff]
        %vm1008 = vcmask 64512
        %v1010 = vsel %vm1008, %v988, 0
        %v1013 = vsel %vm1008, %v1006, 0
        %1015 = vmatprep.subr.mxu0 0.0
        %1016 = vmatpush1.xpose.msra.mxu0 0.0
        %1017 = vmatprep.subr.mxu0 0.0
        %1018 = vmatpush1.xpose.msra.mxu0 0.0
        %1019 = vmatprep.subr.mxu0 0.0
        %1020 = vmatpush1.xpose.msra.mxu0 0.0
        %1021 = vmatprep.subr.mxu0 0.0
        %1022 = vmatpush1.xpose.msra.mxu0 0.0
        %1023 = vmatprep.subr.mxu0 0.0
        %1024 = vmatpush1.xpose.msra.mxu0 0.0
        %1025 = vmatprep.subr.mxu0 0.0
        %1026 = vmatpush1.xpose.msra.mxu0 0.0
        %1027 = vmatprep.subr.mxu0 0.0
        %1028 = vmatpush1.xpose.msra.mxu0 0.0
        %1029 = vmatprep.subr.mxu0 0.0
        %1030 = vmatpush1.xpose.msra.mxu0 0.0
        %1031 = vmatprep.subr.mxu0 0.0
        %1032 = vmatpush1.xpose.msra.mxu0 0.0
        %1033 = vmatprep.subr.mxu0 0.0
        %1034 = vmatpush1.xpose.msra.mxu0 0.0
        %1035 = vmatprep.subr.mxu0 0.0
        %1036 = vmatpush1.xpose.msra.mxu0 0.0
        %1037 = vmatprep.subr.mxu0 0.0
        %1038 = vmatpush1.xpose.msra.mxu0 0.0
        %1039 = vmatprep.subr.mxu0 0.0
        %1040 = vmatpush1.xpose.msra.mxu0 0.0
        %1041 = vmatprep.subr.mxu0 0.0
        %1042 = vmatpush1.xpose.msra.mxu0 0.0
        %1043 = vmatprep.subr.mxu0 0.0
        %1044 = vmatpush1.xpose.msra.mxu0 0.0
        %1045 = vmatprep.subr.mxu0 0.0
        %1046 = vmatpush1.xpose.msra.mxu0 %v1013
        %1047 = vmatprep.subr.mxu0 0.0
        %1048 = vmatpush2.xpose.msra.mxu0 0.0
        %1049 = vmatprep.subr.mxu0 0.0
        %1050 = vmatpush2.xpose.msra.mxu0 0.0
        %1051 = vmatprep.subr.mxu0 0.0
        %1052 = vmatpush2.xpose.msra.mxu0 0.0
        %1053 = vmatprep.subr.mxu0 0.0
        %1054 = vmatpush2.xpose.msra.mxu0 0.0
        %1055 = vmatprep.subr.mxu0 0.0
        %1056 = vmatpush2.xpose.msra.mxu0 0.0
        %1057 = vmatprep.subr.mxu0 0.0
        %1058 = vmatpush2.xpose.msra.mxu0 0.0
        %1059 = vmatprep.subr.mxu0 0.0
        %1060 = vmatpush2.xpose.msra.mxu0 0.0
        %1061 = vmatprep.subr.mxu0 0.0
        %1062 = vmatpush2.xpose.msra.mxu0 0.0
        %1063 = vmatprep.subr.mxu0 0.0
        %1064 = vmatpush2.xpose.msra.mxu0 0.0
        %1065 = vmatprep.subr.mxu0 0.0
        %1066 = vmatpush2.xpose.msra.mxu0 0.0
        %1067 = vmatprep.subr.mxu0 0.0
        %1068 = vmatpush2.xpose.msra.mxu0 0.0
        %1069 = vmatprep.subr.mxu0 0.0
        %1070 = vmatpush2.xpose.msra.mxu0 0.0
        %1071 = vmatprep.subr.mxu0 0.0
        %1072 = vmatpush2.xpose.msra.mxu0 0.0
        %1073 = vmatprep.subr.mxu0 0.0
        %1074 = vmatpush2.xpose.msra.mxu0 0.0
        %1075 = vmatprep.subr.mxu0 0.0
        %1076 = vmatpush2.xpose.msra.mxu0 0.0
        %1077 = vmatprep.subr.mxu0 0.0
        %1078 = vmatpush2.xpose.msra.mxu0 0.0
        %1079 = vmatprep.mubr.f32.mxu0 0.0
        %1080 = vmatmul.mubr.f32.gmra.mxu0 %v1010
        %v1081 = vpop.f32.mrf.mxu0
        %v1082 = vadd.f32 %v1002, %v1081
        %v1083 = vpop.f32.mrf.mxu0
        %1084 = vdwg.mxu0
        %v1085 = vsel %vm1008, %v1082, -inf
        %1086 = vmax.xlane.f32.xlu0 %v1085
        %v1087 = vpop.xlane.xlu0 %1086
        %v1088 = vsub.f32 %v1082, %v1087
        %v1089 = vmul.f32 %v1088, 1.442695
        %v1090 = vpow.pop %v1089
        %v1091 = vsel %vm1008, %v1090, 0.0
        %1092 = vadd.xlane.f32.xlu0 %v1091
        %v1093 = vpop.xlane.xlu0 %1092
        %v1094 = vrcp.pop %v1093
        %v1095 = vmul.f32 %v1090, %v1094
        %v1096 = vpack.c.bf16 %v1095, %v1095
        %vm1097 = vcmask 60416
        %1098 = vst.msk [vmem:[%s696] sm:$0xf] %vm1097, %v1096
        %v1100 = vsel %vm1008, %v1095, 0
        %1102 = vmatprep.subr.mxu0 0.0
        %1103 = vmatpush1.msra.mxu0 0.0
        %1104 = vmatprep.subr.mxu0 0.0
        %1105 = vmatpush1.msra.mxu0 0.0
        %1106 = vmatprep.subr.mxu0 0.0
        %1107 = vmatpush1.msra.mxu0 0.0
        %1108 = vmatprep.subr.mxu0 0.0
        %1109 = vmatpush1.msra.mxu0 0.0
        %1110 = vmatprep.subr.mxu0 0.0
        %1111 = vmatpush1.msra.mxu0 0.0
        %1112 = vmatprep.subr.mxu0 0.0
        %1113 = vmatpush1.msra.mxu0 0.0
        %1114 = vmatprep.subr.mxu0 0.0
        %1115 = vmatpush1.msra.mxu0 0.0
        %1116 = vmatprep.subr.mxu0 0.0
        %1117 = vmatpush1.msra.mxu0 0.0
        %1118 = vmatprep.subr.mxu0 0.0
        %1119 = vmatpush1.msra.mxu0 0.0
        %1120 = vmatprep.subr.mxu0 0.0
        %1121 = vmatpush1.msra.mxu0 0.0
        %1122 = vmatprep.subr.mxu0 0.0
        %1123 = vmatpush1.msra.mxu0 0.0
        %1124 = vmatprep.subr.mxu0 0.0
        %1125 = vmatpush1.msra.mxu0 0.0
        %1126 = vmatprep.subr.mxu0 0.0
        %1127 = vmatpush1.msra.mxu0 0.0
        %1128 = vmatprep.subr.mxu0 0.0
        %1129 = vmatpush1.msra.mxu0 0.0
        %1130 = vmatprep.subr.mxu0 0.0
        %1131 = vmatpush1.msra.mxu0 0.0
        %1132 = vmatprep.subr.mxu0 0.0
        %1133 = vmatpush1.msra.mxu0 %v1007
        %1134 = vmatprep.subr.mxu0 0.0
        %1135 = vmatpush2.msra.mxu0 0.0
        %1136 = vmatprep.subr.mxu0 0.0
        %1137 = vmatpush2.msra.mxu0 0.0
        %1138 = vmatprep.subr.mxu0 0.0
        %1139 = vmatpush2.msra.mxu0 0.0
        %1140 = vmatprep.subr.mxu0 0.0
        %1141 = vmatpush2.msra.mxu0 0.0
        %1142 = vmatprep.subr.mxu0 0.0
        %1143 = vmatpush2.msra.mxu0 0.0
        %1144 = vmatprep.subr.mxu0 0.0
        %1145 = vmatpush2.msra.mxu0 0.0
        %1146 = vmatprep.subr.mxu0 0.0
        %1147 = vmatpush2.msra.mxu0 0.0
        %1148 = vmatprep.subr.mxu0 0.0
        %1149 = vmatpush2.msra.mxu0 0.0
        %1150 = vmatprep.subr.mxu0 0.0
        %1151 = vmatpush2.msra.mxu0 0.0
        %1152 = vmatprep.subr.mxu0 0.0
        %1153 = vmatpush2.msra.mxu0 0.0
        %1154 = vmatprep.subr.mxu0 0.0
        %1155 = vmatpush2.msra.mxu0 0.0
        %1156 = vmatprep.subr.mxu0 0.0
        %1157 = vmatpush2.msra.mxu0 0.0
        %1158 = vmatprep.subr.mxu0 0.0
        %1159 = vmatpush2.msra.mxu0 0.0
        %1160 = vmatprep.subr.mxu0 0.0
        %1161 = vmatpush2.msra.mxu0 0.0
        %1162 = vmatprep.subr.mxu0 0.0
        %1163 = vmatpush2.msra.mxu0 0.0
        %1164 = vmatprep.subr.mxu0 0.0
        %1165 = vmatpush2.msra.mxu0 0.0
        %1166 = vmatprep.mubr.f32.mxu0 0.0
        %1167 = vmatmul.mubr.f32.gmra.mxu0 %v1100
        %v1168 = vpop.f32.mrf.mxu0
        %v1169 = vadd.f32 0.0, %v1168
        %v1170 = vpop.f32.mrf.mxu0
        %1171 = vdwg.mxu0
        %1172 = vrot.lane.b32.xlu0 %v988, 120
        %v1173 = vpop.permute.xlu0 %1172
        %1174 = vrot.lane.b32.xlu0 %v1006, 120
        %v1175 = vpop.permute.xlu0 %1174
        %v1176 = vsel %vm1008, %v1173, 0
        %v1178 = vsel %vm1008, %v1175, 0
        %1180 = vmatprep.subr.mxu0 0.0
        %1181 = vmatpush1.xpose.msra.mxu0 0.0
        %1182 = vmatprep.subr.mxu0 0.0
        %1183 = vmatpush1.xpose.msra.mxu0 0.0
        %1184 = vmatprep.subr.mxu0 0.0
        %1185 = vmatpush1.xpose.msra.mxu0 0.0
        %1186 = vmatprep.subr.mxu0 0.0
        %1187 = vmatpush1.xpose.msra.mxu0 0.0
        %1188 = vmatprep.subr.mxu0 0.0
        %1189 = vmatpush1.xpose.msra.mxu0 0.0
        %1190 = vmatprep.subr.mxu0 0.0
        %1191 = vmatpush1.xpose.msra.mxu0 0.0
        %1192 = vmatprep.subr.mxu0 0.0
        %1193 = vmatpush1.xpose.msra.mxu0 0.0
        %1194 = vmatprep.subr.mxu0 0.0
        %1195 = vmatpush1.xpose.msra.mxu0 0.0
        %1196 = vmatprep.subr.mxu0 0.0
        %1197 = vmatpush1.xpose.msra.mxu0 0.0
        %1198 = vmatprep.subr.mxu0 0.0
        %1199 = vmatpush1.xpose.msra.mxu0 0.0
        %1200 = vmatprep.subr.mxu0 0.0
        %1201 = vmatpush1.xpose.msra.mxu0 0.0
        %1202 = vmatprep.subr.mxu0 0.0
        %1203 = vmatpush1.xpose.msra.mxu0 0.0
        %1204 = vmatprep.subr.mxu0 0.0
        %1205 = vmatpush1.xpose.msra.mxu0 0.0
        %1206 = vmatprep.subr.mxu0 0.0
        %1207 = vmatpush1.xpose.msra.mxu0 0.0
        %1208 = vmatprep.subr.mxu0 0.0
        %1209 = vmatpush1.xpose.msra.mxu0 0.0
        %1210 = vmatprep.subr.mxu0 0.0
        %1211 = vmatpush1.xpose.msra.mxu0 %v1178
        %1212 = vmatprep.subr.mxu0 0.0
        %1213 = vmatpush2.xpose.msra.mxu0 0.0
        %1214 = vmatprep.subr.mxu0 0.0
        %1215 = vmatpush2.xpose.msra.mxu0 0.0
        %1216 = vmatprep.subr.mxu0 0.0
        %1217 = vmatpush2.xpose.msra.mxu0 0.0
        %1218 = vmatprep.subr.mxu0 0.0
        %1219 = vmatpush2.xpose.msra.mxu0 0.0
        %1220 = vmatprep.subr.mxu0 0.0
        %1221 = vmatpush2.xpose.msra.mxu0 0.0
        %1222 = vmatprep.subr.mxu0 0.0
        %1223 = vmatpush2.xpose.msra.mxu0 0.0
        %1224 = vmatprep.subr.mxu0 0.0
        %1225 = vmatpush2.xpose.msra.mxu0 0.0
        %1226 = vmatprep.subr.mxu0 0.0
        %1227 = vmatpush2.xpose.msra.mxu0 0.0
        %1228 = vmatprep.subr.mxu0 0.0
        %1229 = vmatpush2.xpose.msra.mxu0 0.0
        %1230 = vmatprep.subr.mxu0 0.0
        %1231 = vmatpush2.xpose.msra.mxu0 0.0
        %1232 = vmatprep.subr.mxu0 0.0
        %1233 = vmatpush2.xpose.msra.mxu0 0.0
        %1234 = vmatprep.subr.mxu0 0.0
        %1235 = vmatpush2.xpose.msra.mxu0 0.0
        %1236 = vmatprep.subr.mxu0 0.0
        %1237 = vmatpush2.xpose.msra.mxu0 0.0
        %1238 = vmatprep.subr.mxu0 0.0
        %1239 = vmatpush2.xpose.msra.mxu0 0.0
        %1240 = vmatprep.subr.mxu0 0.0
        %1241 = vmatpush2.xpose.msra.mxu0 0.0
        %1242 = vmatprep.subr.mxu0 0.0
        %1243 = vmatpush2.xpose.msra.mxu0 0.0
        %1244 = vmatprep.mubr.f32.mxu0 0.0
        %1245 = vmatmul.mubr.f32.gmra.mxu0 %v1176
        %v1246 = vpop.f32.mrf.mxu0
        %v1247 = vadd.f32 %v1002, %v1246
        %v1248 = vpop.f32.mrf.mxu0
        %1249 = vdwg.mxu0
        %v1250 = vsel %vm1008, %v1247, -inf
        %1251 = vmax.xlane.f32.xlu0 %v1250
        %v1252 = vpop.xlane.xlu0 %1251
        %v1253 = vsub.f32 %v1247, %v1252
        %v1254 = vmul.f32 %v1253, 1.442695
        %v1255 = vpow.pop %v1254
        %v1256 = vsel %vm1008, %v1255, 0.0
        %1257 = vadd.xlane.f32.xlu0 %v1256
        %v1258 = vpop.xlane.xlu0 %1257
        %v1259 = vrcp.pop %v1258
        %v1260 = vmul.f32 %v1255, %v1259
        %v1261 = vpack.c.bf16 %v1260, %v1260
        %s1262 = scalar_lea.vmem %s696, 4 [#allocation16]
        %1263 = vst.msk [vmem:[%s1262] sm:$0xf] %vm1097, %v1261
        %1265 = vrot.lane.b32.xlu0 %v1007, 120
        %v1266 = vpop.permute.xlu0 %1265
        %v1269 = vsel %vm1008, %v1260, 0
        %1271 = vmatprep.subr.mxu0 0.0
        %1272 = vmatpush1.msra.mxu0 0.0
        %1273 = vmatprep.subr.mxu0 0.0
        %1274 = vmatpush1.msra.mxu0 0.0
        %1275 = vmatprep.subr.mxu0 0.0
        %1276 = vmatpush1.msra.mxu0 0.0
        %1277 = vmatprep.subr.mxu0 0.0
        %1278 = vmatpush1.msra.mxu0 0.0
        %1279 = vmatprep.subr.mxu0 0.0
        %1280 = vmatpush1.msra.mxu0 0.0
        %1281 = vmatprep.subr.mxu0 0.0
        %1282 = vmatpush1.msra.mxu0 0.0
        %1283 = vmatprep.subr.mxu0 0.0
        %1284 = vmatpush1.msra.mxu0 0.0
        %1285 = vmatprep.subr.mxu0 0.0
        %1286 = vmatpush1.msra.mxu0 0.0
        %1287 = vmatprep.subr.mxu0 0.0
        %1288 = vmatpush1.msra.mxu0 0.0
        %1289 = vmatprep.subr.mxu0 0.0
        %1290 = vmatpush1.msra.mxu0 0.0
        %1291 = vmatprep.subr.mxu0 0.0
        %1292 = vmatpush1.msra.mxu0 0.0
        %1293 = vmatprep.subr.mxu0 0.0
        %1294 = vmatpush1.msra.mxu0 0.0
        %1295 = vmatprep.subr.mxu0 0.0
        %1296 = vmatpush1.msra.mxu0 0.0
        %1297 = vmatprep.subr.mxu0 0.0
        %1298 = vmatpush1.msra.mxu0 0.0
        %1299 = vmatprep.subr.mxu0 0.0
        %1300 = vmatpush1.msra.mxu0 0.0
        %1301 = vmatprep.subr.mxu0 0.0
        %1302 = vmatpush1.msra.mxu0 %v1266
        %1303 = vmatprep.subr.mxu0 0.0
        %1304 = vmatpush2.msra.mxu0 0.0
        %1305 = vmatprep.subr.mxu0 0.0
        %1306 = vmatpush2.msra.mxu0 0.0
        %1307 = vmatprep.subr.mxu0 0.0
        %1308 = vmatpush2.msra.mxu0 0.0
        %1309 = vmatprep.subr.mxu0 0.0
        %1310 = vmatpush2.msra.mxu0 0.0
        %1311 = vmatprep.subr.mxu0 0.0
        %1312 = vmatpush2.msra.mxu0 0.0
        %1313 = vmatprep.subr.mxu0 0.0
        %1314 = vmatpush2.msra.mxu0 0.0
        %1315 = vmatprep.subr.mxu0 0.0
        %1316 = vmatpush2.msra.mxu0 0.0
        %1317 = vmatprep.subr.mxu0 0.0
        %1318 = vmatpush2.msra.mxu0 0.0
        %1319 = vmatprep.subr.mxu0 0.0
        %1320 = vmatpush2.msra.mxu0 0.0
        %1321 = vmatprep.subr.mxu0 0.0
        %1322 = vmatpush2.msra.mxu0 0.0
        %1323 = vmatprep.subr.mxu0 0.0
        %1324 = vmatpush2.msra.mxu0 0.0
        %1325 = vmatprep.subr.mxu0 0.0
        %1326 = vmatpush2.msra.mxu0 0.0
        %1327 = vmatprep.subr.mxu0 0.0
        %1328 = vmatpush2.msra.mxu0 0.0
        %1329 = vmatprep.subr.mxu0 0.0
        %1330 = vmatpush2.msra.mxu0 0.0
        %1331 = vmatprep.subr.mxu0 0.0
        %1332 = vmatpush2.msra.mxu0 0.0
        %1333 = vmatprep.subr.mxu0 0.0
        %1334 = vmatpush2.msra.mxu0 0.0
        %1335 = vmatprep.mubr.f32.mxu0 0.0
        %1336 = vmatmul.mubr.f32.gmra.mxu0 %v1269
        %v1337 = vpop.f32.mrf.mxu0
        %v1338 = vadd.f32 0.0, %v1337
        %v1339 = vpop.f32.mrf.mxu0
        %1340 = vdwg.mxu0
        %1341 = vrot.lane.b32.xlu0 %v988, 112
        %v1342 = vpop.permute.xlu0 %1341
        %1343 = vrot.lane.b32.xlu0 %v1006, 112
        %v1344 = vpop.permute.xlu0 %1343
        %v1345 = vsel %vm1008, %v1342, 0
        %v1347 = vsel %vm1008, %v1344, 0
        %1349 = vmatprep.subr.mxu0 0.0
        %1350 = vmatpush1.xpose.msra.mxu0 0.0
        %1351 = vmatprep.subr.mxu0 0.0
        %1352 = vmatpush1.xpose.msra.mxu0 0.0
        %1353 = vmatprep.subr.mxu0 0.0
        %1354 = vmatpush1.xpose.msra.mxu0 0.0
        %1355 = vmatprep.subr.mxu0 0.0
        %1356 = vmatpush1.xpose.msra.mxu0 0.0
        %1357 = vmatprep.subr.mxu0 0.0
        %1358 = vmatpush1.xpose.msra.mxu0 0.0
        %1359 = vmatprep.subr.mxu0 0.0
        %1360 = vmatpush1.xpose.msra.mxu0 0.0
        %1361 = vmatprep.subr.mxu0 0.0
        %1362 = vmatpush1.xpose.msra.mxu0 0.0
        %1363 = vmatprep.subr.mxu0 0.0
        %1364 = vmatpush1.xpose.msra.mxu0 0.0
        %1365 = vmatprep.subr.mxu0 0.0
        %1366 = vmatpush1.xpose.msra.mxu0 0.0
        %1367 = vmatprep.subr.mxu0 0.0
        %1368 = vmatpush1.xpose.msra.mxu0 0.0
        %1369 = vmatprep.subr.mxu0 0.0
        %1370 = vmatpush1.xpose.msra.mxu0 0.0
        %1371 = vmatprep.subr.mxu0 0.0
        %1372 = vmatpush1.xpose.msra.mxu0 0.0
        %1373 = vmatprep.subr.mxu0 0.0
        %1374 = vmatpush1.xpose.msra.mxu0 0.0
        %1375 = vmatprep.subr.mxu0 0.0
        %1376 = vmatpush1.xpose.msra.mxu0 0.0
        %1377 = vmatprep.subr.mxu0 0.0
        %1378 = vmatpush1.xpose.msra.mxu0 0.0
        %1379 = vmatprep.subr.mxu0 0.0
        %1380 = vmatpush1.xpose.msra.mxu0 %v1347
        %1381 = vmatprep.subr.mxu0 0.0
        %1382 = vmatpush2.xpose.msra.mxu0 0.0
        %1383 = vmatprep.subr.mxu0 0.0
        %1384 = vmatpush2.xpose.msra.mxu0 0.0
        %1385 = vmatprep.subr.mxu0 0.0
        %1386 = vmatpush2.xpose.msra.mxu0 0.0
        %1387 = vmatprep.subr.mxu0 0.0
        %1388 = vmatpush2.xpose.msra.mxu0 0.0
        %1389 = vmatprep.subr.mxu0 0.0
        %1390 = vmatpush2.xpose.msra.mxu0 0.0
        %1391 = vmatprep.subr.mxu0 0.0
        %1392 = vmatpush2.xpose.msra.mxu0 0.0
        %1393 = vmatprep.subr.mxu0 0.0
        %1394 = vmatpush2.xpose.msra.mxu0 0.0
        %1395 = vmatprep.subr.mxu0 0.0
        %1396 = vmatpush2.xpose.msra.mxu0 0.0
        %1397 = vmatprep.subr.mxu0 0.0
        %1398 = vmatpush2.xpose.msra.mxu0 0.0
        %1399 = vmatprep.subr.mxu0 0.0
        %1400 = vmatpush2.xpose.msra.mxu0 0.0
        %1401 = vmatprep.subr.mxu0 0.0
        %1402 = vmatpush2.xpose.msra.mxu0 0.0
        %1403 = vmatprep.subr.mxu0 0.0
        %1404 = vmatpush2.xpose.msra.mxu0 0.0
        %1405 = vmatprep.subr.mxu0 0.0
        %1406 = vmatpush2.xpose.msra.mxu0 0.0
        %1407 = vmatprep.subr.mxu0 0.0
        %1408 = vmatpush2.xpose.msra.mxu0 0.0
        %1409 = vmatprep.subr.mxu0 0.0
        %1410 = vmatpush2.xpose.msra.mxu0 0.0
        %1411 = vmatprep.subr.mxu0 0.0
        %1412 = vmatpush2.xpose.msra.mxu0 0.0
        %1413 = vmatprep.mubr.f32.mxu0 0.0
        %1414 = vmatmul.mubr.f32.gmra.mxu0 %v1345
        %v1415 = vpop.f32.mrf.mxu0
        %v1416 = vadd.f32 %v1002, %v1415
        %v1417 = vpop.f32.mrf.mxu0
        %1418 = vdwg.mxu0
        %v1419 = vsel %vm1008, %v1416, -inf
        %1420 = vmax.xlane.f32.xlu0 %v1419
        %v1421 = vpop.xlane.xlu0 %1420
        %v1422 = vsub.f32 %v1416, %v1421
        %v1423 = vmul.f32 %v1422, 1.442695
        %v1424 = vpow.pop %v1423
        %v1425 = vsel %vm1008, %v1424, 0.0
        %1426 = vadd.xlane.f32.xlu0 %v1425
        %v1427 = vpop.xlane.xlu0 %1426
        %v1428 = vrcp.pop %v1427
        %v1429 = vmul.f32 %v1424, %v1428
        %v1430 = vpack.c.bf16 %v1429, %v1429
        %s1431 = scalar_lea.vmem %s696, 8 [#allocation16]
        %1432 = vst.msk [vmem:[%s1431] sm:$0xf] %vm1097, %v1430
        %1433 = vrot.lane.b32.xlu0 %v1007, 112
        %v1434 = vpop.permute.xlu0 %1433
        %v1437 = vsel %vm1008, %v1429, 0
        %1439 = vmatprep.subr.mxu0 0.0
        %1440 = vmatpush1.msra.mxu0 0.0
        %1441 = vmatprep.subr.mxu0 0.0
        %1442 = vmatpush1.msra.mxu0 0.0
        %1443 = vmatprep.subr.mxu0 0.0
        %1444 = vmatpush1.msra.mxu0 0.0
        %1445 = vmatprep.subr.mxu0 0.0
        %1446 = vmatpush1.msra.mxu0 0.0
        %1447 = vmatprep.subr.mxu0 0.0
        %1448 = vmatpush1.msra.mxu0 0.0
        %1449 = vmatprep.subr.mxu0 0.0
        %1450 = vmatpush1.msra.mxu0 0.0
        %1451 = vmatprep.subr.mxu0 0.0
        %1452 = vmatpush1.msra.mxu0 0.0
        %1453 = vmatprep.subr.mxu0 0.0
        %1454 = vmatpush1.msra.mxu0 0.0
        %1455 = vmatprep.subr.mxu0 0.0
        %1456 = vmatpush1.msra.mxu0 0.0
        %1457 = vmatprep.subr.mxu0 0.0
        %1458 = vmatpush1.msra.mxu0 0.0
        %1459 = vmatprep.subr.mxu0 0.0
        %1460 = vmatpush1.msra.mxu0 0.0
        %1461 = vmatprep.subr.mxu0 0.0
        %1462 = vmatpush1.msra.mxu0 0.0
        %1463 = vmatprep.subr.mxu0 0.0
        %1464 = vmatpush1.msra.mxu0 0.0
        %1465 = vmatprep.subr.mxu0 0.0
        %1466 = vmatpush1.msra.mxu0 0.0
        %1467 = vmatprep.subr.mxu0 0.0
        %1468 = vmatpush1.msra.mxu0 0.0
        %1469 = vmatprep.subr.mxu0 0.0
        %1470 = vmatpush1.msra.mxu0 %v1434
        %1471 = vmatprep.subr.mxu0 0.0
        %1472 = vmatpush2.msra.mxu0 0.0
        %1473 = vmatprep.subr.mxu0 0.0
        %1474 = vmatpush2.msra.mxu0 0.0
        %1475 = vmatprep.subr.mxu0 0.0
        %1476 = vmatpush2.msra.mxu0 0.0
        %1477 = vmatprep.subr.mxu0 0.0
        %1478 = vmatpush2.msra.mxu0 0.0
        %1479 = vmatprep.subr.mxu0 0.0
        %1480 = vmatpush2.msra.mxu0 0.0
        %1481 = vmatprep.subr.mxu0 0.0
        %1482 = vmatpush2.msra.mxu0 0.0
        %1483 = vmatprep.subr.mxu0 0.0
        %1484 = vmatpush2.msra.mxu0 0.0
        %1485 = vmatprep.subr.mxu0 0.0
        %1486 = vmatpush2.msra.mxu0 0.0
        %1487 = vmatprep.subr.mxu0 0.0
        %1488 = vmatpush2.msra.mxu0 0.0
        %1489 = vmatprep.subr.mxu0 0.0
        %1490 = vmatpush2.msra.mxu0 0.0
        %1491 = vmatprep.subr.mxu0 0.0
        %1492 = vmatpush2.msra.mxu0 0.0
        %1493 = vmatprep.subr.mxu0 0.0
        %1494 = vmatpush2.msra.mxu0 0.0
        %1495 = vmatprep.subr.mxu0 0.0
        %1496 = vmatpush2.msra.mxu0 0.0
        %1497 = vmatprep.subr.mxu0 0.0
        %1498 = vmatpush2.msra.mxu0 0.0
        %1499 = vmatprep.subr.mxu0 0.0
        %1500 = vmatpush2.msra.mxu0 0.0
        %1501 = vmatprep.subr.mxu0 0.0
        %1502 = vmatpush2.msra.mxu0 0.0
        %1503 = vmatprep.mubr.f32.mxu0 0.0
        %1504 = vmatmul.mubr.f32.gmra.mxu0 %v1437
        %v1505 = vpop.f32.mrf.mxu0
        %v1506 = vadd.f32 0.0, %v1505
        %v1507 = vpop.f32.mrf.mxu0
        %1508 = vdwg.mxu0
        %1509 = vrot.lane.b32.xlu0 %v988, 104
        %v1510 = vpop.permute.xlu0 %1509
        %1511 = vrot.lane.b32.xlu0 %v1006, 104
        %v1512 = vpop.permute.xlu0 %1511
        %v1513 = vsel %vm1008, %v1510, 0
        %v1515 = vsel %vm1008, %v1512, 0
        %1517 = vmatprep.subr.mxu0 0.0
        %1518 = vmatpush1.xpose.msra.mxu0 0.0
        %1519 = vmatprep.subr.mxu0 0.0
        %1520 = vmatpush1.xpose.msra.mxu0 0.0
        %1521 = vmatprep.subr.mxu0 0.0
        %1522 = vmatpush1.xpose.msra.mxu0 0.0
        %1523 = vmatprep.subr.mxu0 0.0
        %1524 = vmatpush1.xpose.msra.mxu0 0.0
        %1525 = vmatprep.subr.mxu0 0.0
        %1526 = vmatpush1.xpose.msra.mxu0 0.0
        %1527 = vmatprep.subr.mxu0 0.0
        %1528 = vmatpush1.xpose.msra.mxu0 0.0
        %1529 = vmatprep.subr.mxu0 0.0
        %1530 = vmatpush1.xpose.msra.mxu0 0.0
        %1531 = vmatprep.subr.mxu0 0.0
        %1532 = vmatpush1.xpose.msra.mxu0 0.0
        %1533 = vmatprep.subr.mxu0 0.0
        %1534 = vmatpush1.xpose.msra.mxu0 0.0
        %1535 = vmatprep.subr.mxu0 0.0
        %1536 = vmatpush1.xpose.msra.mxu0 0.0
        %1537 = vmatprep.subr.mxu0 0.0
        %1538 = vmatpush1.xpose.msra.mxu0 0.0
        %1539 = vmatprep.subr.mxu0 0.0
        %1540 = vmatpush1.xpose.msra.mxu0 0.0
        %1541 = vmatprep.subr.mxu0 0.0
        %1542 = vmatpush1.xpose.msra.mxu0 0.0
        %1543 = vmatprep.subr.mxu0 0.0
        %1544 = vmatpush1.xpose.msra.mxu0 0.0
        %1545 = vmatprep.subr.mxu0 0.0
        %1546 = vmatpush1.xpose.msra.mxu0 0.0
        %1547 = vmatprep.subr.mxu0 0.0
        %1548 = vmatpush1.xpose.msra.mxu0 %v1515
        %1549 = vmatprep.subr.mxu0 0.0
        %1550 = vmatpush2.xpose.msra.mxu0 0.0
        %1551 = vmatprep.subr.mxu0 0.0
        %1552 = vmatpush2.xpose.msra.mxu0 0.0
        %1553 = vmatprep.subr.mxu0 0.0
        %1554 = vmatpush2.xpose.msra.mxu0 0.0
        %1555 = vmatprep.subr.mxu0 0.0
        %1556 = vmatpush2.xpose.msra.mxu0 0.0
        %1557 = vmatprep.subr.mxu0 0.0
        %1558 = vmatpush2.xpose.msra.mxu0 0.0
        %1559 = vmatprep.subr.mxu0 0.0
        %1560 = vmatpush2.xpose.msra.mxu0 0.0
        %1561 = vmatprep.subr.mxu0 0.0
        %1562 = vmatpush2.xpose.msra.mxu0 0.0
        %1563 = vmatprep.subr.mxu0 0.0
        %1564 = vmatpush2.xpose.msra.mxu0 0.0
        %1565 = vmatprep.subr.mxu0 0.0
        %1566 = vmatpush2.xpose.msra.mxu0 0.0
        %1567 = vmatprep.subr.mxu0 0.0
        %1568 = vmatpush2.xpose.msra.mxu0 0.0
        %1569 = vmatprep.subr.mxu0 0.0
        %1570 = vmatpush2.xpose.msra.mxu0 0.0
        %1571 = vmatprep.subr.mxu0 0.0
        %1572 = vmatpush2.xpose.msra.mxu0 0.0
        %1573 = vmatprep.subr.mxu0 0.0
        %1574 = vmatpush2.xpose.msra.mxu0 0.0
        %1575 = vmatprep.subr.mxu0 0.0
        %1576 = vmatpush2.xpose.msra.mxu0 0.0
        %1577 = vmatprep.subr.mxu0 0.0
        %1578 = vmatpush2.xpose.msra.mxu0 0.0
        %1579 = vmatprep.subr.mxu0 0.0
        %1580 = vmatpush2.xpose.msra.mxu0 0.0
        %1581 = vmatprep.mubr.f32.mxu0 0.0
        %1582 = vmatmul.mubr.f32.gmra.mxu0 %v1513
        %v1583 = vpop.f32.mrf.mxu0
        %v1584 = vadd.f32 %v1002, %v1583
        %v1585 = vpop.f32.mrf.mxu0
        %1586 = vdwg.mxu0
        %v1587 = vsel %vm1008, %v1584, -inf
        %1588 = vmax.xlane.f32.xlu0 %v1587
        %v1589 = vpop.xlane.xlu0 %1588
        %v1590 = vsub.f32 %v1584, %v1589
        %v1591 = vmul.f32 %v1590, 1.442695
        %v1592 = vpow.pop %v1591
        %v1593 = vsel %vm1008, %v1592, 0.0
        %1594 = vadd.xlane.f32.xlu0 %v1593
        %v1595 = vpop.xlane.xlu0 %1594
        %v1596 = vrcp.pop %v1595
        %v1597 = vmul.f32 %v1592, %v1596
        %v1598 = vpack.c.bf16 %v1597, %v1597
        %s1599 = scalar_lea.vmem %s696, 12 [#allocation16]
        %1600 = vst.msk [vmem:[%s1599] sm:$0xf] %vm1097, %v1598
        %1601 = vrot.lane.b32.xlu0 %v1007, 104
        %v1602 = vpop.permute.xlu0 %1601
        %v1605 = vsel %vm1008, %v1597, 0
        %1607 = vmatprep.subr.mxu0 0.0
        %1608 = vmatpush1.msra.mxu0 0.0
        %1609 = vmatprep.subr.mxu0 0.0
        %1610 = vmatpush1.msra.mxu0 0.0
        %1611 = vmatprep.subr.mxu0 0.0
        %1612 = vmatpush1.msra.mxu0 0.0
        %1613 = vmatprep.subr.mxu0 0.0
        %1614 = vmatpush1.msra.mxu0 0.0
        %1615 = vmatprep.subr.mxu0 0.0
        %1616 = vmatpush1.msra.mxu0 0.0
        %1617 = vmatprep.subr.mxu0 0.0
        %1618 = vmatpush1.msra.mxu0 0.0
        %1619 = vmatprep.subr.mxu0 0.0
        %1620 = vmatpush1.msra.mxu0 0.0
        %1621 = vmatprep.subr.mxu0 0.0
        %1622 = vmatpush1.msra.mxu0 0.0
        %1623 = vmatprep.subr.mxu0 0.0
        %1624 = vmatpush1.msra.mxu0 0.0
        %1625 = vmatprep.subr.mxu0 0.0
        %1626 = vmatpush1.msra.mxu0 0.0
        %1627 = vmatprep.subr.mxu0 0.0
        %1628 = vmatpush1.msra.mxu0 0.0
        %1629 = vmatprep.subr.mxu0 0.0
        %1630 = vmatpush1.msra.mxu0 0.0
        %1631 = vmatprep.subr.mxu0 0.0
        %1632 = vmatpush1.msra.mxu0 0.0
        %1633 = vmatprep.subr.mxu0 0.0
        %1634 = vmatpush1.msra.mxu0 0.0
        %1635 = vmatprep.subr.mxu0 0.0
        %1636 = vmatpush1.msra.mxu0 0.0
        %1637 = vmatprep.subr.mxu0 0.0
        %1638 = vmatpush1.msra.mxu0 %v1602
        %1639 = vmatprep.subr.mxu0 0.0
        %1640 = vmatpush2.msra.mxu0 0.0
        %1641 = vmatprep.subr.mxu0 0.0
        %1642 = vmatpush2.msra.mxu0 0.0
        %1643 = vmatprep.subr.mxu0 0.0
        %1644 = vmatpush2.msra.mxu0 0.0
        %1645 = vmatprep.subr.mxu0 0.0
        %1646 = vmatpush2.msra.mxu0 0.0
        %1647 = vmatprep.subr.mxu0 0.0
        %1648 = vmatpush2.msra.mxu0 0.0
        %1649 = vmatprep.subr.mxu0 0.0
        %1650 = vmatpush2.msra.mxu0 0.0
        %1651 = vmatprep.subr.mxu0 0.0
        %1652 = vmatpush2.msra.mxu0 0.0
        %1653 = vmatprep.subr.mxu0 0.0
        %1654 = vmatpush2.msra.mxu0 0.0
        %1655 = vmatprep.subr.mxu0 0.0
        %1656 = vmatpush2.msra.mxu0 0.0
        %1657 = vmatprep.subr.mxu0 0.0
        %1658 = vmatpush2.msra.mxu0 0.0
        %1659 = vmatprep.subr.mxu0 0.0
        %1660 = vmatpush2.msra.mxu0 0.0
        %1661 = vmatprep.subr.mxu0 0.0
        %1662 = vmatpush2.msra.mxu0 0.0
        %1663 = vmatprep.subr.mxu0 0.0
        %1664 = vmatpush2.msra.mxu0 0.0
        %1665 = vmatprep.subr.mxu0 0.0
        %1666 = vmatpush2.msra.mxu0 0.0
        %1667 = vmatprep.subr.mxu0 0.0
        %1668 = vmatpush2.msra.mxu0 0.0
        %1669 = vmatprep.subr.mxu0 0.0
        %1670 = vmatpush2.msra.mxu0 0.0
        %1671 = vmatprep.mubr.f32.mxu0 0.0
        %1672 = vmatmul.mubr.f32.gmra.mxu0 %v1605
        %v1673 = vpop.f32.mrf.mxu0
        %v1674 = vadd.f32 0.0, %v1673
        %v1675 = vpop.f32.mrf.mxu0
        %1676 = vdwg.mxu0
        %1678 = vrot.lane.b32.xlu0 %v1338, 8
        %v1679 = vpop.permute.xlu0 %1678
        %1682 = vrot.lane.b32.xlu0 %v1506, 16
        %v1683 = vpop.permute.xlu0 %1682
        %1686 = vrot.lane.b32.xlu0 %v1674, 24
        %v1687 = vpop.permute.xlu0 %1686
        %v1689 = vsel %vm1008, %v1169, %v1679
        %vm1690 = vcmask 130048
        %v1691 = vsel %vm1690, %v1689, %v1683
        %vm1692 = vcmask 195584
        %v1693 = vsel %vm1692, %v1691, %v1687
        %v1694 = vld [vmem:[#allocation12] sm:$0xf]
        %v1695 = vld [vmem:[#allocation12 + $0x4] sm:$0xf]
        %v1696 = vld [vmem:[#allocation12 + $0x8] sm:$0xf]
        %v1697 = vld [vmem:[#allocation12 + $0xc] sm:$0xf]
        %v1698 = vunpack.c.l.bf16 %v1694
        %v1699 = vunpack.c.l.bf16 %v1695
        %v1700 = vunpack.c.l.bf16 %v1696
        %v1701 = vunpack.c.l.bf16 %v1697
        %v1702 = vld [vmem:[%s10] sm:$0x1]
        %v1704 = vlaneseq
        %v1705 = vshrl.u32 %v1704, 7
        %v1706 = vsub.s32 0, %v1705
        %v1707 = vrot.slane %v1702, %v1706
        %v1710 = vsel %vm881, %v1693, 0
        %1712 = vmatprep.subr.mxu0 0.0
        %1713 = vmatpush1.msra.mxu0 0.0
        %1714 = vmatprep.subr.mxu0 0.0
        %1715 = vmatpush1.msra.mxu0 0.0
        %1716 = vmatprep.subr.mxu0 0.0
        %1717 = vmatpush1.msra.mxu0 0.0
        %1718 = vmatprep.subr.mxu0 0.0
        %1719 = vmatpush1.msra.mxu0 0.0
        %1720 = vmatprep.subr.mxu0 0.0
        %1721 = vmatpush1.msra.mxu0 0.0
        %1722 = vmatprep.subr.mxu0 0.0
        %1723 = vmatpush1.msra.mxu0 0.0
        %1724 = vmatprep.subr.mxu0 0.0
        %1725 = vmatpush1.msra.mxu0 0.0
        %1726 = vmatprep.subr.mxu0 0.0
        %1727 = vmatpush1.msra.mxu0 0.0
        %1728 = vmatprep.subr.mxu0 0.0
        %1729 = vmatpush1.msra.mxu0 0.0
        %1730 = vmatprep.subr.mxu0 0.0
        %1731 = vmatpush1.msra.mxu0 0.0
        %1732 = vmatprep.subr.mxu0 0.0
        %1733 = vmatpush1.msra.mxu0 0.0
        %1734 = vmatprep.subr.mxu0 0.0
        %1735 = vmatpush1.msra.mxu0 0.0
        %1736 = vmatprep.subr.mxu0 0.0
        %1737 = vmatpush1.msra.mxu0 %v1701
        %1738 = vmatprep.subr.mxu0 0.0
        %1739 = vmatpush1.msra.mxu0 %v1700
        %1740 = vmatprep.subr.mxu0 0.0
        %1741 = vmatpush1.msra.mxu0 %v1699
        %1742 = vmatprep.subr.mxu0 0.0
        %1743 = vmatpush1.msra.mxu0 %v1698
        %1744 = vmatprep.subr.mxu0 0.0
        %1745 = vmatpush2.msra.mxu0 0.0
        %1746 = vmatprep.subr.mxu0 0.0
        %1747 = vmatpush2.msra.mxu0 0.0
        %1748 = vmatprep.subr.mxu0 0.0
        %1749 = vmatpush2.msra.mxu0 0.0
        %1750 = vmatprep.subr.mxu0 0.0
        %1751 = vmatpush2.msra.mxu0 0.0
        %1752 = vmatprep.subr.mxu0 0.0
        %1753 = vmatpush2.msra.mxu0 0.0
        %1754 = vmatprep.subr.mxu0 0.0
        %1755 = vmatpush2.msra.mxu0 0.0
        %1756 = vmatprep.subr.mxu0 0.0
        %1757 = vmatpush2.msra.mxu0 0.0
        %1758 = vmatprep.subr.mxu0 0.0
        %1759 = vmatpush2.msra.mxu0 0.0
        %1760 = vmatprep.subr.mxu0 0.0
        %1761 = vmatpush2.msra.mxu0 0.0
        %1762 = vmatprep.subr.mxu0 0.0
        %1763 = vmatpush2.msra.mxu0 0.0
        %1764 = vmatprep.subr.mxu0 0.0
        %1765 = vmatpush2.msra.mxu0 0.0
        %1766 = vmatprep.subr.mxu0 0.0
        %1767 = vmatpush2.msra.mxu0 0.0
        %1768 = vmatprep.subr.mxu0 0.0
        %1769 = vmatpush2.msra.mxu0 0.0
        %1770 = vmatprep.subr.mxu0 0.0
        %1771 = vmatpush2.msra.mxu0 0.0
        %1772 = vmatprep.subr.mxu0 0.0
        %1773 = vmatpush2.msra.mxu0 0.0
        %1774 = vmatprep.subr.mxu0 0.0
        %1775 = vmatpush2.msra.mxu0 0.0
        %1776 = vmatprep.mubr.f32.mxu0 0.0
        %1777 = vmatmul.mubr.f32.gmra.mxu0 %v1710
        %v1778 = vpop.f32.mrf.mxu0
        %v1779 = vadd.f32 %v1707, %v1778
        %v1780 = vpop.f32.mrf.mxu0
        %1781 = vdwg.mxu0
        %v1782 = vadd.f32 %v1779, %v878
        %v1783 = vmul.f32 %v1782, %v1005
        %v1784 = vld [vmem:[%s11] sm:$0x1]
        %v1785 = vld [vmem:[%s12] sm:$0x1]
        %v1786 = vsel %vm881, %v1783, 0.0
        %1787 = vadd.xlane.f32.xlu0 %v1786
        %v1788 = vpop.xlane.xlu0 %1787
        %v1789 = vmul.f32 %v1788, %v885
        %v1790 = vsub.f32 %v1783, %v1789
        %v1791 = vmul.f32 %v1790, %v1790
        %v1792 = vsel %vm881, %v1791, 0.0
        %1793 = vadd.xlane.f32.xlu0 %v1792
        %v1794 = vpop.xlane.xlu0 %1793
        %v1795 = vmul.f32 %v1794, %v885
        %v1796 = vadd.f32 %v1795, 1e-06
        %v1797 = vrsqrt.pop %v1796
        %v1798 = vmul.f32 %v1790, %v1797
        %v1800 = vlaneseq
        %v1801 = vshrl.u32 %v1800, 7
        %v1802 = vsub.s32 0, %v1801
        %v1803 = vrot.slane %v1784, %v1802
        %v1805 = vmul.f32 %v1798, %v1803
        %v1807 = vlaneseq
        %v1808 = vshrl.u32 %v1807, 7
        %v1809 = vsub.s32 0, %v1808
        %v1810 = vrot.slane %v1785, %v1809
        %v1812 = vadd.f32 %v1805, %v1810
        %v1813 = vld [vmem:[#allocation14] sm:$0xf]
        %v1814 = vld [vmem:[#allocation14 + $0x4] sm:$0xf]
        %v1815 = vld [vmem:[#allocation14 + $0x8] sm:$0xf]
        %v1816 = vld [vmem:[#allocation14 + $0xc] sm:$0xf]
        %v1817 = vunpack.c.l.bf16 %v1813
        %v1818 = vunpack.c.l.bf16 %v1814
        %v1819 = vunpack.c.l.bf16 %v1815
        %v1820 = vunpack.c.l.bf16 %v1816
        %v1821 = vld [vmem:[%s14] sm:$0x1]
        %v1823 = vlaneseq
        %v1824 = vshrl.u32 %v1823, 7
        %v1825 = vsub.s32 0, %v1824
        %v1826 = vrot.slane %v1821, %v1825
        %v1829 = vsel %vm881, %v1812, 0
        %1831 = vmatprep.subr.mxu0 0.0
        %1832 = vmatpush1.msra.mxu0 0.0
        %1833 = vmatprep.subr.mxu0 0.0
        %1834 = vmatpush1.msra.mxu0 0.0
        %1835 = vmatprep.subr.mxu0 0.0
        %1836 = vmatpush1.msra.mxu0 0.0
        %1837 = vmatprep.subr.mxu0 0.0
        %1838 = vmatpush1.msra.mxu0 0.0
        %1839 = vmatprep.subr.mxu0 0.0
        %1840 = vmatpush1.msra.mxu0 0.0
        %1841 = vmatprep.subr.mxu0 0.0
        %1842 = vmatpush1.msra.mxu0 0.0
        %1843 = vmatprep.subr.mxu0 0.0
        %1844 = vmatpush1.msra.mxu0 0.0
        %1845 = vmatprep.subr.mxu0 0.0
        %1846 = vmatpush1.msra.mxu0 0.0
        %1847 = vmatprep.subr.mxu0 0.0
        %1848 = vmatpush1.msra.mxu0 0.0
        %1849 = vmatprep.subr.mxu0 0.0
        %1850 = vmatpush1.msra.mxu0 0.0
        %1851 = vmatprep.subr.mxu0 0.0
        %1852 = vmatpush1.msra.mxu0 0.0
        %1853 = vmatprep.subr.mxu0 0.0
        %1854 = vmatpush1.msra.mxu0 0.0
        %1855 = vmatprep.subr.mxu0 0.0
        %1856 = vmatpush1.msra.mxu0 %v1820
        %1857 = vmatprep.subr.mxu0 0.0
        %1858 = vmatpush1.msra.mxu0 %v1819
        %1859 = vmatprep.subr.mxu0 0.0
        %1860 = vmatpush1.msra.mxu0 %v1818
        %1861 = vmatprep.subr.mxu0 0.0
        %1862 = vmatpush1.msra.mxu0 %v1817
        %1863 = vmatprep.subr.mxu0 0.0
        %1864 = vmatpush2.msra.mxu0 0.0
        %1865 = vmatprep.subr.mxu0 0.0
        %1866 = vmatpush2.msra.mxu0 0.0
        %1867 = vmatprep.subr.mxu0 0.0
        %1868 = vmatpush2.msra.mxu0 0.0
        %1869 = vmatprep.subr.mxu0 0.0
        %1870 = vmatpush2.msra.mxu0 0.0
        %1871 = vmatprep.subr.mxu0 0.0
        %1872 = vmatpush2.msra.mxu0 0.0
        %1873 = vmatprep.subr.mxu0 0.0
        %1874 = vmatpush2.msra.mxu0 0.0
        %1875 = vmatprep.subr.mxu0 0.0
        %1876 = vmatpush2.msra.mxu0 0.0
        %1877 = vmatprep.subr.mxu0 0.0
        %1878 = vmatpush2.msra.mxu0 0.0
        %1879 = vmatprep.subr.mxu0 0.0
        %1880 = vmatpush2.msra.mxu0 0.0
        %1881 = vmatprep.subr.mxu0 0.0
        %1882 = vmatpush2.msra.mxu0 0.0
        %1883 = vmatprep.subr.mxu0 0.0
        %1884 = vmatpush2.msra.mxu0 0.0
        %1885 = vmatprep.subr.mxu0 0.0
        %1886 = vmatpush2.msra.mxu0 0.0
        %1887 = vmatprep.subr.mxu0 0.0
        %1888 = vmatpush2.msra.mxu0 0.0
        %1889 = vmatprep.subr.mxu0 0.0
        %1890 = vmatpush2.msra.mxu0 0.0
        %1891 = vmatprep.subr.mxu0 0.0
        %1892 = vmatpush2.msra.mxu0 0.0
        %1893 = vmatprep.subr.mxu0 0.0
        %1894 = vmatpush2.msra.mxu0 0.0
        %1895 = vmatprep.mubr.f32.mxu0 0.0
        %1896 = vmatmul.mubr.f32.gmra.mxu0 %v1829
        %v1897 = vpop.f32.mrf.mxu0
        %v1898 = vadd.f32 %v1826, %v1897
        %v1899 = vpop.f32.mrf.mxu0
        %1900 = vdwg.mxu0
        %v1901 = vmul.f32 %v1898, 0.5
        %v1902 = vmul.f32 %v1898, 0.044715
        %v1903 = vmul.f32 %v1902, %v1898
        %v1904 = vmul.f32 %v1903, %v1898
        %v1905 = vadd.f32 %v1898, %v1904
        %v1906 = vmul.f32 %v1905, 0.7978846
        %v1907 = vtanh.pop %v1906
        %v1908 = vadd.f32 %v1907, 1.0
        %v1909 = vmul.f32 %v1901, %v1908
        %v1910 = vld [vmem:[%s15] sm:$0xf]
        %v1911 = vld [vmem:[%s15 + $0x4] sm:$0xf]
        %v1912 = vld [vmem:[%s15 + $0x8] sm:$0xf]
        %v1913 = vld [vmem:[%s15 + $0xc] sm:$0xf]
        %v1914 = vld [vmem:[%s15 + $0x10] sm:$0xf]
        %v1915 = vld [vmem:[%s15 + $0x14] sm:$0xf]
        %v1916 = vld [vmem:[%s15 + $0x18] sm:$0xf]
        %v1917 = vld [vmem:[%s15 + $0x1c] sm:$0xf]
        %v1918 = vunpack.c.l.bf16 %v1910
        %v1919 = vunpack.c.l.bf16 %v1911
        %v1920 = vunpack.c.l.bf16 %v1912
        %v1921 = vunpack.c.l.bf16 %v1913
        %v1922 = vunpack.c.l.bf16 %v1914
        %v1923 = vunpack.c.l.bf16 %v1915
        %v1924 = vunpack.c.l.bf16 %v1916
        %v1925 = vunpack.c.l.bf16 %v1917
        %v1926 = vld [vmem:[%s16] sm:$0x1]
        %v1928 = vlaneseq
        %v1929 = vshrl.u32 %v1928, 7
        %v1930 = vsub.s32 0, %v1929
        %v1931 = vrot.slane %v1926, %v1930
        %vm1933 = vcmask 523264
        %v1935 = vsel %vm1933, %v1909, 0
        %1937 = vmatprep.subr.mxu0 0.0
        %1938 = vmatpush1.msra.mxu0 0.0
        %1939 = vmatprep.subr.mxu0 0.0
        %1940 = vmatpush1.msra.mxu0 0.0
        %1941 = vmatprep.subr.mxu0 0.0
        %1942 = vmatpush1.msra.mxu0 0.0
        %1943 = vmatprep.subr.mxu0 0.0
        %1944 = vmatpush1.msra.mxu0 0.0
        %1945 = vmatprep.subr.mxu0 0.0
        %1946 = vmatpush1.msra.mxu0 0.0
        %1947 = vmatprep.subr.mxu0 0.0
        %1948 = vmatpush1.msra.mxu0 0.0
        %1949 = vmatprep.subr.mxu0 0.0
        %1950 = vmatpush1.msra.mxu0 0.0
        %1951 = vmatprep.subr.mxu0 0.0
        %1952 = vmatpush1.msra.mxu0 0.0
        %1953 = vmatprep.subr.mxu0 0.0
        %1954 = vmatpush1.msra.mxu0 %v1925
        %1955 = vmatprep.subr.mxu0 0.0
        %1956 = vmatpush1.msra.mxu0 %v1924
        %1957 = vmatprep.subr.mxu0 0.0
        %1958 = vmatpush1.msra.mxu0 %v1923
        %1959 = vmatprep.subr.mxu0 0.0
        %1960 = vmatpush1.msra.mxu0 %v1922
        %1961 = vmatprep.subr.mxu0 0.0
        %1962 = vmatpush1.msra.mxu0 %v1921
        %1963 = vmatprep.subr.mxu0 0.0
        %1964 = vmatpush1.msra.mxu0 %v1920
        %1965 = vmatprep.subr.mxu0 0.0
        %1966 = vmatpush1.msra.mxu0 %v1919
        %1967 = vmatprep.subr.mxu0 0.0
        %1968 = vmatpush1.msra.mxu0 %v1918
        %1969 = vmatprep.subr.mxu0 0.0
        %1970 = vmatpush2.msra.mxu0 0.0
        %1971 = vmatprep.subr.mxu0 0.0
        %1972 = vmatpush2.msra.mxu0 0.0
        %1973 = vmatprep.subr.mxu0 0.0
        %1974 = vmatpush2.msra.mxu0 0.0
        %1975 = vmatprep.subr.mxu0 0.0
        %1976 = vmatpush2.msra.mxu0 0.0
        %1977 = vmatprep.subr.mxu0 0.0
        %1978 = vmatpush2.msra.mxu0 0.0
        %1979 = vmatprep.subr.mxu0 0.0
        %1980 = vmatpush2.msra.mxu0 0.0
        %1981 = vmatprep.subr.mxu0 0.0
        %1982 = vmatpush2.msra.mxu0 0.0
        %1983 = vmatprep.subr.mxu0 0.0
        %1984 = vmatpush2.msra.mxu0 0.0
        %1985 = vmatprep.subr.mxu0 0.0
        %1986 = vmatpush2.msra.mxu0 0.0
        %1987 = vmatprep.subr.mxu0 0.0
        %1988 = vmatpush2.msra.mxu0 0.0
        %1989 = vmatprep.subr.mxu0 0.0
        %1990 = vmatpush2.msra.mxu0 0.0
        %1991 = vmatprep.subr.mxu0 0.0
        %1992 = vmatpush2.msra.mxu0 0.0
        %1993 = vmatprep.subr.mxu0 0.0
        %1994 = vmatpush2.msra.mxu0 0.0
        %1995 = vmatprep.subr.mxu0 0.0
        %1996 = vmatpush2.msra.mxu0 0.0
        %1997 = vmatprep.subr.mxu0 0.0
        %1998 = vmatpush2.msra.mxu0 0.0
        %1999 = vmatprep.subr.mxu0 0.0
        %2000 = vmatpush2.msra.mxu0 0.0
        %2001 = vmatprep.mubr.f32.mxu0 0.0
        %2002 = vmatmul.mubr.f32.gmra.mxu0 %v1935
        %v2003 = vpop.f32.mrf.mxu0
        %v2004 = vadd.f32 %v1931, %v2003
        %v2005 = vpop.f32.mrf.mxu0
        %2006 = vdwg.mxu0
        %v2007 = vadd.f32 %v2004, %v1783
        %v2008 = vmul.f32 %v2007, %v1005
        %2009 = vst.msk [vmem:[%s689] sm:$0xff] %vm881, %v2008
        %s2010 = sand.u32 %s422, 1
        %s2011 = scalar_lea.sflag [#allocation8], %s2010
        %s2012 = sand.u32 %s422, 1
        %s2013 = smul.addr %s2012, 8
        %s2014 = scalar_lea.vmem [#allocation15], %s2013
        %s2015 = sand.u32 %s450, 1
        %s2016 = scalar_lea.sflag [#allocation17], %s2015
        %s2017 = sand.u32 %s450, 1
        %s2018 = smul.addr %s2017, 16
        %s2019 = scalar_lea.vmem [#allocation16], %s2018
        // Predicated region
        $region109: #{tpu_custom_call.1} parent=83 // pred_check
          %p2020 = pneg %p432
        $region110: #{tpu_custom_call.1} parent=83 // pred_check_branch
          %2022 = sbr.rel (%p2020) target = $region112
        $region111: #{tpu_custom_call.1} parent=83 // pred_region
          %s2024 = ssub.s32 128, 128
          %2025 = vsyncadd %s2011, %s2024
          %s2026 = sadd.s32 %s52, %s51
          %s2027 = smul.addr %s2026, 128
          %s2028 = scalar_lea.hbm %s17, %s2027
          %s2030 = sshll.u32 %s2014, 4
          %s2031 = int_to_ptr.vmem [resolvable:$true] %s2030
          %2033 = dma.vmem_to_hbm [thread:$0]  %s2031, 128, %s2028, %s2011
        $region112: #{tpu_custom_call.1} parent=83 // pred_fallthru
          _
        // Predicated region
        $region113: #{tpu_custom_call.1} parent=83 // pred_check
          %p2034 = pneg %p460
        $region114: #{tpu_custom_call.1} parent=83 // pred_check_branch
          %2036 = sbr.rel (%p2034) target = $region116
        $region115: #{tpu_custom_call.1} parent=83 // pred_region
          %s2038 = ssub.s32 256, 256
          %2039 = vsyncadd %s2016, %s2038
          %s2040 = smul.addr %s51, 4
          %s2041 = sadd.s32 %s52, %s2040
          %s2042 = smul.addr %s2041, 64
          %s2043 = scalar_lea.hbm %s18, %s2042
          %s2044 = sshll.u32 %s2019, 4
          %s2045 = int_to_ptr.vmem [resolvable:$true] %s2044
          %2050 = dma.vmem_to_hbm [thread:$0]  %s2045, 256, %s2043, %s2016, 64, 64, 4
        $region116: #{tpu_custom_call.1} parent=83 // pred_fallthru
          _
      $region84: #{tpu_custom_call.1} parent=5 // pred_fallthru
        _
      %p2051 = scmp.le.s32.totalorder 2, %s42
      // Predicated region
      $region117: #{tpu_custom_call.1} parent=5 // pred_check
        %p2052 = pneg %p2051
      $region118: #{tpu_custom_call.1} parent=5 // pred_check_branch
        %2054 = sbr.rel (%p2052) target = $region120
      $region119: #{tpu_custom_call.1} parent=5 // pred_region
        %s2055 = ssub.s32 %s42, 2
        // Predicated region
        $region121: #{tpu_custom_call.1} parent=119 // pred_check
          %p2056 = pneg %p438
        $region122: #{tpu_custom_call.1} parent=119 // pred_check_branch
          %2058 = sbr.rel (%p2056) target = $region124
        $region123: #{tpu_custom_call.1} parent=119 // pred_region
          %s2059 = sand.u32 %s423, 1
          %s2060 = scalar_lea.sflag [#allocation8], %s2059
          %s2061 = sand.u32 %s423, 1
          %s2062 = smul.addr %s2061, 8
          %s2063 = scalar_lea.vmem [#allocation15], %s2062
          %2064 = dma.done %s2060, 128
        $region124: #{tpu_custom_call.1} parent=119 // pred_fallthru
          _
        // Predicated region
        $region125: #{tpu_custom_call.1} parent=119 // pred_check
          %p2065 = pneg %p466
        $region126: #{tpu_custom_call.1} parent=119 // pred_check_branch
          %2067 = sbr.rel (%p2065) target = $region128
        $region127: #{tpu_custom_call.1} parent=119 // pred_region
          %s2068 = sand.u32 %s451, 1
          %s2069 = scalar_lea.sflag [#allocation17], %s2068
          %s2070 = sand.u32 %s451, 1
          %s2071 = smul.addr %s2070, 16
          %s2072 = scalar_lea.vmem [#allocation16], %s2071
          %2073 = dma.done %s2069, 256
        $region128: #{tpu_custom_call.1} parent=119 // pred_fallthru
          _
      $region120: #{tpu_custom_call.1} parent=5 // pred_fallthru
        _
    $region6: #{tpu_custom_call.1} parent=1 // loop_footer
      %s46 = sadd.s32 1, %s42
    $region7: #{tpu_custom_call.1} parent=1 // loop_footer_branch
      %41 = sbr.rel target = $region3
    $region8: #{tpu_custom_call.1} parent=1 // loop_exit
      _
    %2074 = vsyncpa [#allocation7], 1
    %s2075 = scalar_lea.sflag [#allocation7], 1
    %2076 = vsyncpa %s2075, 1
    %2077 = vsyncpa [#allocation10], 1
    %s2078 = scalar_lea.sflag [#allocation10], 1
    %2079 = vsyncpa %s2078, 1
    %2080 = vsyncpa [#allocation13], 1
    %2081 = vsyncpa [#allocation8], 1
    %s2082 = scalar_lea.sflag [#allocation8], 1
    %2083 = vsyncpa %s2082, 1
    %2084 = vsyncpa [#allocation17], 1
    %s2085 = scalar_lea.sflag [#allocation17], 1
    %2086 = vsyncpa %s2085, 1

</llo_original>
